<compile_context>
chip_gen: v7x
topology: tpu7x:2x2x1
jax: 0.10.0
libtpu: 0.0.40
codegen_flags: <defaults>
</compile_context>

<pallas_src>
import math
import numpy as np
import jax
import jax.numpy as jnp
from jax import lax
from jax.experimental import pallas as pl
from jax.experimental.pallas import tpu as pltpu  # noqa: F401  (imported for TPU backend symmetry)

# ---- module-consistent sizes ---------------------------------------------------------
D_MODEL = 32
NHEAD = 4
DIM_FF = D_MODEL * 1          # SelfAttnLayer passes d_model * 1 as dim_feedforward
SEQ = 8
BATCH = 2
HEAD_DIM = D_MODEL // NHEAD
R = BATCH * SEQ               # flattened token rows (batch-major)
EPS = 1e-5                    # nn.LayerNorm default


# ---- fused kernel ---------------------------------------------------------------------
def _fused_layer_kernel(x_ref, wqkv_ref, wo_ref, w1_ref, w2_ref, vec_ref,
                        o_ref, attnw_ref):
    E, H, Dh, L, N, F = D_MODEL, NHEAD, HEAD_DIM, SEQ, BATCH, DIM_FF
    x = x_ref[...]                                                    # (R, E)

    # packed bias / affine rows: [bqkv, bo, b1, b2, g1, beta1, g2, beta2]
    vec = vec_ref[...]                                                # (8, 3E)
    bqkv = vec[0:1, :]                                                # (1, 3E)
    bo = vec[1:2, :E]
    b1 = vec[2:3, :F]
    b2 = vec[3:4, :E]
    g1, beta1 = vec[4:5, :E], vec[5:6, :E]
    g2, beta2 = vec[6:7, :E], vec[7:8, :E]

    # --- fused QKV input projection: one lane-dense (R, 3E) MXU matmul -----------------
    # 1/sqrt(Dh) is pre-folded into the Q columns of wqkv / bqkv (prepare_params).
    qkv = jnp.dot(x, wqkv_ref[...], preferred_element_type=jnp.float32) + bqkv  # (R, 3E)

    dn = (((1,), (1,)), ((), ()))     # contract last dims: q @ k.T without explicit transpose

    y_blocks = []                     # per-batch (L, E) out-projected attention outputs
    for n in range(N):                # static unroll, N = 2
        r0 = n * L
        y_n = jnp.zeros((L, E), jnp.float32)
        w_sum = jnp.zeros((L, L), jnp.float32)
        for h in range(H):            # static unroll, H = 4
            c = h * Dh
            q_h = qkv[r0:r0 + L, c:c + Dh]                            # (L, Dh) pre-scaled
            k_h = qkv[r0:r0 + L, E + c:E + c + Dh]                    # (L, Dh)
            v_h = qkv[r0:r0 + L, 2 * E + c:2 * E + c + Dh]            # (L, Dh)
            s = lax.dot_general(q_h, k_h, dn,
                                preferred_element_type=jnp.float32)   # (L, L)
            s = s - jnp.max(s, axis=-1, keepdims=True)
            p = jnp.exp(s)
            p = p / jnp.sum(p, axis=-1, keepdims=True)
            o_h = jnp.dot(p, v_h, preferred_element_type=jnp.float32)  # (L, Dh)
            # head merge fused into the out-projection (lane-dense (L, E) accumulation)
            y_n = y_n + jnp.dot(o_h, wo_ref[c:c + Dh, :],
                                preferred_element_type=jnp.float32)
            w_sum = w_sum + p
        # nn.MultiheadAttention returns head-averaged weights; write this batch directly.
        attnw_ref[r0:r0 + L, :] = w_sum * (1.0 / H)
        y_blocks.append(y_n)

    y = jnp.concatenate(y_blocks, axis=0) + bo                        # (R, E)

    # --- residual + LayerNorm (norm1) ----------------------------------------------------
    s1 = x + y
    mu = jnp.mean(s1, axis=-1, keepdims=True)
    var = jnp.mean((s1 - mu) ** 2, axis=-1, keepdims=True)
    s1 = (s1 - mu) * lax.rsqrt(var + EPS) * g1 + beta1

    # --- FFN (linear1 -> relu -> linear2) + residual + LayerNorm (norm2) -----------------
    h1 = jnp.dot(s1, w1_ref[...], preferred_element_type=jnp.float32) + b1
    h1 = jnp.maximum(h1, 0.0)
    y2 = jnp.dot(h1, w2_ref[...], preferred_element_type=jnp.float32) + b2
    s2 = s1 + y2
    mu = jnp.mean(s2, axis=-1, keepdims=True)
    var = jnp.mean((s2 - mu) ** 2, axis=-1, keepdims=True)
    o_ref[...] = (s2 - mu) * lax.rsqrt(var + EPS) * g2 + beta2


# ---- wrapper ----------------------------------------------------------------------------
def _full_spec(shape):
    nd = len(shape)
    return pl.BlockSpec(shape, lambda i, _nd=nd: (0,) * _nd)


def self_attn_layer(x, prep):
    """SelfAttnLayer.forward (mask=None, eval).  x: (batch, seq, d_model)."""
    N, L, E = x.shape
    x2d = x.reshape(N * L, E)          # batch-major token rows; math is order-invariant
    out2d, w2d = pl.pallas_call(
        _fused_layer_kernel,
        out_shape=(jax.ShapeDtypeStruct((N * L, E), jnp.float32),
                   jax.ShapeDtypeStruct((N * L, L), jnp.float32)),
        grid=(1,),
        in_specs=[_full_spec((N * L, E)),
                  _full_spec((E, 3 * E)),
                  _full_spec((E, E)),
                  _full_spec((E, DIM_FF)),
                  _full_spec((DIM_FF, E)),
                  _full_spec((8, 3 * E))],
        out_specs=(_full_spec((N * L, E)), _full_spec((N * L, L))),
    )(x2d, prep["wqkv"], prep["wo"], prep["w1"], prep["w2"], prep["vec"])
    return out2d.reshape(N, L, E), w2d.reshape(N, L, L)


# ---- one-time weight layout preparation (outside jit) -----------------------------------
def prepare_params(p):
    E, F = D_MODEL, DIM_FF
    W = 3 * E
    scale = 1.0 / math.sqrt(HEAD_DIM)
    # fold the attention scale into the Q third of the in-projection
    col_scale = jnp.concatenate([jnp.full((E,), scale, jnp.float32),
                                 jnp.ones((2 * E,), jnp.float32)])
    wqkv = p["in_proj_w"].T * col_scale[None, :]      # (E, 3E), Q columns pre-scaled
    bqkv = p["in_proj_b"] * col_scale                 # (3E,)

    def row(v):
        v = jnp.asarray(v, jnp.float32).reshape(-1)
        return jnp.pad(v, (0, W - v.shape[0]))

    vec = jnp.stack([row(bqkv), row(p["out_proj_b"]), row(p["lin1_b"]), row(p["lin2_b"]),
                     row(p["norm1_g"]), row(p["norm1_b"]),
                     row(p["norm2_g"]), row(p["norm2_b"])], axis=0)   # (8, 3E)

    return {
        "wqkv": wqkv,                 # (E, 3E)
        "wo": p["out_proj_w"].T,      # (E, E)
        "w1": p["lin1_w"].T,          # (E, F)
        "w2": p["lin2_w"].T,          # (F, E)
        "vec": vec,                   # (8, 3E) packed biases / LN affine
    }


# ---- pure-JAX reference (mirrors PyTorch SelfAttnLayer.forward, eval mode) --------------
def reference(k_in, p):
    src = jnp.transpose(k_in, (1, 0, 2))          # (L, N, E) — nn.MultiheadAttention layout
    L, N, E = src.shape
    H, Dh = NHEAD, E // NHEAD
    x = src.reshape(L * N, E)
    qkv = x @ p["in_proj_w"].T + p["in_proj_b"]
    q = qkv[:, :E].reshape(L, N, H, Dh).transpose(1, 2, 0, 3)
    k = qkv[:, E:2 * E].reshape(L, N, H, Dh).transpose(1, 2, 0, 3)
    v = qkv[:, 2 * E:].reshape(L, N, H, Dh).transpose(1, 2, 0, 3)
    s = jnp.einsum("nhqd,nhkd->nhqk", q / math.sqrt(Dh), k)
    w = jax.nn.softmax(s, axis=-1)
    o = jnp.einsum("nhqk,nhkd->nhqd", w, v)
    attn_w = jnp.mean(w, axis=1)                  # (N, L, L)
    a = o.transpose(2, 0, 1, 3).reshape(L * N, E)
    a = a @ p["out_proj_w"].T + p["out_proj_b"]
    s1 = x + a
    mu = s1.mean(-1, keepdims=True)
    var = ((s1 - mu) ** 2).mean(-1, keepdims=True)
    s1 = (s1 - mu) * jax.lax.rsqrt(var + EPS) * p["norm1_g"] + p["norm1_b"]
    h = jnp.maximum(s1 @ p["lin1_w"].T + p["lin1_b"], 0.0)
    y = h @ p["lin2_w"].T + p["lin2_b"]
    s2 = s1 + y
    mu = s2.mean(-1, keepdims=True)
    var = ((s2 - mu) ** 2).mean(-1, keepdims=True)
    s2 = (s2 - mu) * jax.lax.rsqrt(var + EPS) * p["norm2_g"] + p["norm2_b"]
    out = s2.reshape(L, N, E)
    return jnp.transpose(out, (1, 0, 2)), attn_w  # back to (batch, seq, d_model)


# ---- deterministic parameter init (PyTorch-shaped) ---------------------------------------
def init_params(key):
    ks = jax.random.split(key, 6)
    u = lambda k, shape, b: jax.random.uniform(k, shape, jnp.float32, -b, b)
    E, F = D_MODEL, DIM_FF
    return {
        "in_proj_w": u(ks[0], (3 * E, E), 1.0 / math.sqrt(E)),
        "in_proj_b": jnp.zeros((3 * E,), jnp.float32),
        "out_proj_w": u(ks[1], (E, E), 1.0 / math.sqrt(E)),
        "out_proj_b": jnp.zeros((E,), jnp.float32),
        "lin1_w": u(ks[2], (F, E), 1.0 / math.sqrt(E)),
        "lin1_b": u(ks[3], (F,), 1.0 / math.sqrt(E)),
        "lin2_w": u(ks[4], (E, F), 1.0 / math.sqrt(F)),
        "lin2_b": u(ks[5], (E,), 1.0 / math.sqrt(F)),
        "norm1_g": jnp.ones((E,), jnp.float32),
        "norm1_b": jnp.zeros((E,), jnp.float32),
        "norm2_g": jnp.ones((E,), jnp.float32),
        "norm2_b": jnp.zeros((E,), jnp.float32),
    }


if __name__ == "__main__":
    key = jax.random.PRNGKey(0)
    k_in, k_par = jax.random.split(key)
    # SelfAttnLayer input: (batch, seq, d_model)
    x = jax.random.normal(k_in, (BATCH, SEQ, D_MODEL), jnp.float32)
    params = init_params(k_par)
    prep = prepare_params(params)      # one-time weight layout prep, outside jit

    fn = jax.jit(self_attn_layer)
    out, attn = fn(x, prep)
    out = jax.block_until_ready(out)
    attn = jax.block_until_ready(attn)

    ref_out, ref_attn = reference(x, params)
    np.testing.assert_allclose(np.asarray(out), np.asarray(ref_out), rtol=1e-5, atol=1e-5)
    np.testing.assert_allclose(np.asarray(attn), np.asarray(ref_attn), rtol=1e-5, atol=1e-5)

    assert out.shape == (BATCH, SEQ, D_MODEL) and attn.shape == (BATCH, SEQ, SEQ)
    print("KERNEL_OK")
</pallas_src>

<mosaic_0001>
module attributes {stable_mosaic.version = 11 : i64} {
  func.func @_fused_layer_kernel(%arg0: i32, %arg1: memref<16x32xf32, #tpu.memory_space<vmem>>, %arg2: memref<32x96xf32, #tpu.memory_space<vmem>>, %arg3: memref<32x32xf32, #tpu.memory_space<vmem>>, %arg4: memref<32x32xf32, #tpu.memory_space<vmem>>, %arg5: memref<32x32xf32, #tpu.memory_space<vmem>>, %arg6: memref<8x96xf32, #tpu.memory_space<vmem>>, %arg7: memref<16x32xf32, #tpu.memory_space<vmem>>, %arg8: memref<16x8xf32, #tpu.memory_space<vmem>>) attributes {dimension_semantics = [#tpu.dimension_semantics<arbitrary>], iteration_bounds = array<i64: 1>, scalar_prefetch = 0 : i64, scratch_operands = 0 : i64, tpu.core_type = #tpu.core_type<tc>, window_params = [{pipeline_mode = #tpu.pipeline_mode<synchronous>, transform_indices = @transform_0, window_bounds = array<i64: 16, 32>}, {pipeline_mode = #tpu.pipeline_mode<synchronous>, transform_indices = @transform_1, window_bounds = array<i64: 32, 96>}, {pipeline_mode = #tpu.pipeline_mode<synchronous>, transform_indices = @transform_2, window_bounds = array<i64: 32, 32>}, {pipeline_mode = #tpu.pipeline_mode<synchronous>, transform_indices = @transform_3, window_bounds = array<i64: 32, 32>}, {pipeline_mode = #tpu.pipeline_mode<synchronous>, transform_indices = @transform_4, window_bounds = array<i64: 32, 32>}, {pipeline_mode = #tpu.pipeline_mode<synchronous>, transform_indices = @transform_5, window_bounds = array<i64: 8, 96>}, {pipeline_mode = #tpu.pipeline_mode<synchronous>, transform_indices = @transform_6, window_bounds = array<i64: 16, 32>}, {pipeline_mode = #tpu.pipeline_mode<synchronous>, transform_indices = @transform_7, window_bounds = array<i64: 16, 8>}]} {
    %c0 = arith.constant 0 : index
    %c0_0 = arith.constant 0 : index
    %0 = vector.load %arg1[%c0, %c0_0] : memref<16x32xf32, #tpu.memory_space<vmem>>, vector<16x32xf32>
    %c0_1 = arith.constant 0 : index
    %c0_2 = arith.constant 0 : index
    %1 = vector.load %arg6[%c0_1, %c0_2] : memref<8x96xf32, #tpu.memory_space<vmem>>, vector<8x96xf32>
    %2 = vector.extract_strided_slice %1 {offsets = [0, 0], sizes = [1, 96], strides = [1, 1]} : vector<8x96xf32> to vector<1x96xf32>
    %3 = vector.extract_strided_slice %1 {offsets = [1, 0], sizes = [1, 32], strides = [1, 1]} : vector<8x96xf32> to vector<1x32xf32>
    %4 = vector.extract_strided_slice %1 {offsets = [2, 0], sizes = [1, 32], strides = [1, 1]} : vector<8x96xf32> to vector<1x32xf32>
    %5 = vector.extract_strided_slice %1 {offsets = [3, 0], sizes = [1, 32], strides = [1, 1]} : vector<8x96xf32> to vector<1x32xf32>
    %6 = vector.extract_strided_slice %1 {offsets = [4, 0], sizes = [1, 32], strides = [1, 1]} : vector<8x96xf32> to vector<1x32xf32>
    %7 = vector.extract_strided_slice %1 {offsets = [5, 0], sizes = [1, 32], strides = [1, 1]} : vector<8x96xf32> to vector<1x32xf32>
    %8 = vector.extract_strided_slice %1 {offsets = [6, 0], sizes = [1, 32], strides = [1, 1]} : vector<8x96xf32> to vector<1x32xf32>
    %9 = vector.extract_strided_slice %1 {offsets = [7, 0], sizes = [1, 32], strides = [1, 1]} : vector<8x96xf32> to vector<1x32xf32>
    %c0_3 = arith.constant 0 : index
    %c0_4 = arith.constant 0 : index
    %10 = vector.load %arg2[%c0_3, %c0_4] : memref<32x96xf32, #tpu.memory_space<vmem>>, vector<32x96xf32>
    %cst = arith.constant dense<0.000000e+00> : vector<16x96xf32>
    %11 = tpu.matmul %0, %10, %cst {dimension_numbers = #tpu.dot_dimension_numbers<[1], [0], [0], [1], [0, 0, 1, 1], [], []>} : vector<16x32xf32>, vector<32x96xf32>, vector<16x96xf32> -> vector<16x96xf32>
    %12 = vector.broadcast %2 : vector<1x96xf32> to vector<16x96xf32>
    %13 = arith.addf %11, %12 : vector<16x96xf32>
    %cst_5 = arith.constant 0.000000e+00 : f32
    %14 = vector.broadcast %cst_5 : f32 to vector<8x32xf32>
    %cst_6 = arith.constant 0.000000e+00 : f32
    %15 = vector.broadcast %cst_6 : f32 to vector<8x8xf32>
    %16 = vector.extract_strided_slice %13 {offsets = [0, 0], sizes = [8, 8], strides = [1, 1]} : vector<16x96xf32> to vector<8x8xf32>
    %17 = vector.extract_strided_slice %13 {offsets = [0, 32], sizes = [8, 8], strides = [1, 1]} : vector<16x96xf32> to vector<8x8xf32>
    %18 = vector.extract_strided_slice %13 {offsets = [0, 64], sizes = [8, 8], strides = [1, 1]} : vector<16x96xf32> to vector<8x8xf32>
    %cst_7 = arith.constant dense<0.000000e+00> : vector<8x8xf32>
    %19 = tpu.matmul %16, %17, %cst_7 {dimension_numbers = #tpu.dot_dimension_numbers<[1], [1], [0], [0], [0, 0, 1, 0], [], []>} : vector<8x8xf32>, vector<8x8xf32>, vector<8x8xf32> -> vector<8x8xf32>
    %cst_8 = arith.constant dense<0xFF800000> : vector<8xf32>
    %20 = vector.multi_reduction <maximumf>, %19, %cst_8 [1] : vector<8x8xf32> to vector<8xf32>
    %21 = vector.shape_cast %20 : vector<8xf32> to vector<8x1xf32>
    %22 = vector.broadcast %21 : vector<8x1xf32> to vector<8x8xf32>
    %23 = arith.subf %19, %22 : vector<8x8xf32>
    %24 = math.exp %23 : vector<8x8xf32>
    %cst_9 = arith.constant dense<0.000000e+00> : vector<8xf32>
    %25 = vector.multi_reduction <add>, %24, %cst_9 [1] : vector<8x8xf32> to vector<8xf32>
    %26 = vector.shape_cast %25 : vector<8xf32> to vector<8x1xf32>
    %27 = vector.broadcast %26 : vector<8x1xf32> to vector<8x8xf32>
    %28 = arith.divf %24, %27 : vector<8x8xf32>
    %cst_10 = arith.constant dense<0.000000e+00> : vector<8x8xf32>
    %29 = tpu.matmul %28, %18, %cst_10 {dimension_numbers = #tpu.dot_dimension_numbers<[1], [0], [0], [1], [0, 0, 1, 1], [], []>} : vector<8x8xf32>, vector<8x8xf32>, vector<8x8xf32> -> vector<8x8xf32>
    %c0_11 = arith.constant 0 : index
    %c0_12 = arith.constant 0 : index
    %30 = vector.load %arg3[%c0_11, %c0_12] : memref<32x32xf32, #tpu.memory_space<vmem>>, vector<8x32xf32>
    %cst_13 = arith.constant dense<0.000000e+00> : vector<8x32xf32>
    %31 = tpu.matmul %29, %30, %cst_13 {dimension_numbers = #tpu.dot_dimension_numbers<[1], [0], [0], [1], [0, 0, 1, 1], [], []>} : vector<8x8xf32>, vector<8x32xf32>, vector<8x32xf32> -> vector<8x32xf32>
    %32 = arith.addf %14, %31 : vector<8x32xf32>
    %33 = arith.addf %15, %28 : vector<8x8xf32>
    %34 = vector.extract_strided_slice %13 {offsets = [0, 8], sizes = [8, 8], strides = [1, 1]} : vector<16x96xf32> to vector<8x8xf32>
    %35 = vector.extract_strided_slice %13 {offsets = [0, 40], sizes = [8, 8], strides = [1, 1]} : vector<16x96xf32> to vector<8x8xf32>
    %36 = vector.extract_strided_slice %13 {offsets = [0, 72], sizes = [8, 8], strides = [1, 1]} : vector<16x96xf32> to vector<8x8xf32>
    %cst_14 = arith.constant dense<0.000000e+00> : vector<8x8xf32>
    %37 = tpu.matmul %34, %35, %cst_14 {dimension_numbers = #tpu.dot_dimension_numbers<[1], [1], [0], [0], [0, 0, 1, 0], [], []>} : vector<8x8xf32>, vector<8x8xf32>, vector<8x8xf32> -> vector<8x8xf32>
    %cst_15 = arith.constant dense<0xFF800000> : vector<8xf32>
    %38 = vector.multi_reduction <maximumf>, %37, %cst_15 [1] : vector<8x8xf32> to vector<8xf32>
    %39 = vector.shape_cast %38 : vector<8xf32> to vector<8x1xf32>
    %40 = vector.broadcast %39 : vector<8x1xf32> to vector<8x8xf32>
    %41 = arith.subf %37, %40 : vector<8x8xf32>
    %42 = math.exp %41 : vector<8x8xf32>
    %cst_16 = arith.constant dense<0.000000e+00> : vector<8xf32>
    %43 = vector.multi_reduction <add>, %42, %cst_16 [1] : vector<8x8xf32> to vector<8xf32>
    %44 = vector.shape_cast %43 : vector<8xf32> to vector<8x1xf32>
    %45 = vector.broadcast %44 : vector<8x1xf32> to vector<8x8xf32>
    %46 = arith.divf %42, %45 : vector<8x8xf32>
    %cst_17 = arith.constant dense<0.000000e+00> : vector<8x8xf32>
    %47 = tpu.matmul %46, %36, %cst_17 {dimension_numbers = #tpu.dot_dimension_numbers<[1], [0], [0], [1], [0, 0, 1, 1], [], []>} : vector<8x8xf32>, vector<8x8xf32>, vector<8x8xf32> -> vector<8x8xf32>
    %c8 = arith.constant 8 : index
    %c0_18 = arith.constant 0 : index
    %48 = vector.load %arg3[%c8, %c0_18] : memref<32x32xf32, #tpu.memory_space<vmem>>, vector<8x32xf32>
    %cst_19 = arith.constant dense<0.000000e+00> : vector<8x32xf32>
    %49 = tpu.matmul %47, %48, %cst_19 {dimension_numbers = #tpu.dot_dimension_numbers<[1], [0], [0], [1], [0, 0, 1, 1], [], []>} : vector<8x8xf32>, vector<8x32xf32>, vector<8x32xf32> -> vector<8x32xf32>
    %50 = arith.addf %32, %49 : vector<8x32xf32>
    %51 = arith.addf %33, %46 : vector<8x8xf32>
    %52 = vector.extract_strided_slice %13 {offsets = [0, 16], sizes = [8, 8], strides = [1, 1]} : vector<16x96xf32> to vector<8x8xf32>
    %53 = vector.extract_strided_slice %13 {offsets = [0, 48], sizes = [8, 8], strides = [1, 1]} : vector<16x96xf32> to vector<8x8xf32>
    %54 = vector.extract_strided_slice %13 {offsets = [0, 80], sizes = [8, 8], strides = [1, 1]} : vector<16x96xf32> to vector<8x8xf32>
    %cst_20 = arith.constant dense<0.000000e+00> : vector<8x8xf32>
    %55 = tpu.matmul %52, %53, %cst_20 {dimension_numbers = #tpu.dot_dimension_numbers<[1], [1], [0], [0], [0, 0, 1, 0], [], []>} : vector<8x8xf32>, vector<8x8xf32>, vector<8x8xf32> -> vector<8x8xf32>
    %cst_21 = arith.constant dense<0xFF800000> : vector<8xf32>
    %56 = vector.multi_reduction <maximumf>, %55, %cst_21 [1] : vector<8x8xf32> to vector<8xf32>
    %57 = vector.shape_cast %56 : vector<8xf32> to vector<8x1xf32>
    %58 = vector.broadcast %57 : vector<8x1xf32> to vector<8x8xf32>
    %59 = arith.subf %55, %58 : vector<8x8xf32>
    %60 = math.exp %59 : vector<8x8xf32>
    %cst_22 = arith.constant dense<0.000000e+00> : vector<8xf32>
    %61 = vector.multi_reduction <add>, %60, %cst_22 [1] : vector<8x8xf32> to vector<8xf32>
    %62 = vector.shape_cast %61 : vector<8xf32> to vector<8x1xf32>
    %63 = vector.broadcast %62 : vector<8x1xf32> to vector<8x8xf32>
    %64 = arith.divf %60, %63 : vector<8x8xf32>
    %cst_23 = arith.constant dense<0.000000e+00> : vector<8x8xf32>
    %65 = tpu.matmul %64, %54, %cst_23 {dimension_numbers = #tpu.dot_dimension_numbers<[1], [0], [0], [1], [0, 0, 1, 1], [], []>} : vector<8x8xf32>, vector<8x8xf32>, vector<8x8xf32> -> vector<8x8xf32>
    %c16 = arith.constant 16 : index
    %c0_24 = arith.constant 0 : index
    %66 = vector.load %arg3[%c16, %c0_24] : memref<32x32xf32, #tpu.memory_space<vmem>>, vector<8x32xf32>
    %cst_25 = arith.constant dense<0.000000e+00> : vector<8x32xf32>
    %67 = tpu.matmul %65, %66, %cst_25 {dimension_numbers = #tpu.dot_dimension_numbers<[1], [0], [0], [1], [0, 0, 1, 1], [], []>} : vector<8x8xf32>, vector<8x32xf32>, vector<8x32xf32> -> vector<8x32xf32>
    %68 = arith.addf %50, %67 : vector<8x32xf32>
    %69 = arith.addf %51, %64 : vector<8x8xf32>
    %70 = vector.extract_strided_slice %13 {offsets = [0, 24], sizes = [8, 8], strides = [1, 1]} : vector<16x96xf32> to vector<8x8xf32>
    %71 = vector.extract_strided_slice %13 {offsets = [0, 56], sizes = [8, 8], strides = [1, 1]} : vector<16x96xf32> to vector<8x8xf32>
    %72 = vector.extract_strided_slice %13 {offsets = [0, 88], sizes = [8, 8], strides = [1, 1]} : vector<16x96xf32> to vector<8x8xf32>
    %cst_26 = arith.constant dense<0.000000e+00> : vector<8x8xf32>
    %73 = tpu.matmul %70, %71, %cst_26 {dimension_numbers = #tpu.dot_dimension_numbers<[1], [1], [0], [0], [0, 0, 1, 0], [], []>} : vector<8x8xf32>, vector<8x8xf32>, vector<8x8xf32> -> vector<8x8xf32>
    %cst_27 = arith.constant dense<0xFF800000> : vector<8xf32>
    %74 = vector.multi_reduction <maximumf>, %73, %cst_27 [1] : vector<8x8xf32> to vector<8xf32>
    %75 = vector.shape_cast %74 : vector<8xf32> to vector<8x1xf32>
    %76 = vector.broadcast %75 : vector<8x1xf32> to vector<8x8xf32>
    %77 = arith.subf %73, %76 : vector<8x8xf32>
    %78 = math.exp %77 : vector<8x8xf32>
    %cst_28 = arith.constant dense<0.000000e+00> : vector<8xf32>
    %79 = vector.multi_reduction <add>, %78, %cst_28 [1] : vector<8x8xf32> to vector<8xf32>
    %80 = vector.shape_cast %79 : vector<8xf32> to vector<8x1xf32>
    %81 = vector.broadcast %80 : vector<8x1xf32> to vector<8x8xf32>
    %82 = arith.divf %78, %81 : vector<8x8xf32>
    %cst_29 = arith.constant dense<0.000000e+00> : vector<8x8xf32>
    %83 = tpu.matmul %82, %72, %cst_29 {dimension_numbers = #tpu.dot_dimension_numbers<[1], [0], [0], [1], [0, 0, 1, 1], [], []>} : vector<8x8xf32>, vector<8x8xf32>, vector<8x8xf32> -> vector<8x8xf32>
    %c24 = arith.constant 24 : index
    %c0_30 = arith.constant 0 : index
    %84 = vector.load %arg3[%c24, %c0_30] : memref<32x32xf32, #tpu.memory_space<vmem>>, vector<8x32xf32>
    %cst_31 = arith.constant dense<0.000000e+00> : vector<8x32xf32>
    %85 = tpu.matmul %83, %84, %cst_31 {dimension_numbers = #tpu.dot_dimension_numbers<[1], [0], [0], [1], [0, 0, 1, 1], [], []>} : vector<8x8xf32>, vector<8x32xf32>, vector<8x32xf32> -> vector<8x32xf32>
    %86 = arith.addf %68, %85 : vector<8x32xf32>
    %87 = arith.addf %69, %82 : vector<8x8xf32>
    %cst_32 = arith.constant 2.500000e-01 : f32
    %88 = vector.broadcast %cst_32 : f32 to vector<8x8xf32>
    %89 = arith.mulf %87, %88 : vector<8x8xf32>
    %c0_33 = arith.constant 0 : index
    %c0_34 = arith.constant 0 : index
    %90 = vector.load %arg8[%c0_33, %c0_34] : memref<16x8xf32, #tpu.memory_space<vmem>>, vector<8x8xf32>
    tpu.vector_store %arg8[%c0_33, %c0_34], %89 {strides = array<i32>} : memref<16x8xf32, #tpu.memory_space<vmem>>, vector<8x8xf32>,
    %cst_35 = arith.constant 0.000000e+00 : f32
    %91 = vector.broadcast %cst_35 : f32 to vector<8x32xf32>
    %cst_36 = arith.constant 0.000000e+00 : f32
    %92 = vector.broadcast %cst_36 : f32 to vector<8x8xf32>
    %93 = vector.extract_strided_slice %13 {offsets = [8, 0], sizes = [8, 8], strides = [1, 1]} : vector<16x96xf32> to vector<8x8xf32>
    %94 = vector.extract_strided_slice %13 {offsets = [8, 32], sizes = [8, 8], strides = [1, 1]} : vector<16x96xf32> to vector<8x8xf32>
    %95 = vector.extract_strided_slice %13 {offsets = [8, 64], sizes = [8, 8], strides = [1, 1]} : vector<16x96xf32> to vector<8x8xf32>
    %cst_37 = arith.constant dense<0.000000e+00> : vector<8x8xf32>
    %96 = tpu.matmul %93, %94, %cst_37 {dimension_numbers = #tpu.dot_dimension_numbers<[1], [1], [0], [0], [0, 0, 1, 0], [], []>} : vector<8x8xf32>, vector<8x8xf32>, vector<8x8xf32> -> vector<8x8xf32>
    %cst_38 = arith.constant dense<0xFF800000> : vector<8xf32>
    %97 = vector.multi_reduction <maximumf>, %96, %cst_38 [1] : vector<8x8xf32> to vector<8xf32>
    %98 = vector.shape_cast %97 : vector<8xf32> to vector<8x1xf32>
    %99 = vector.broadcast %98 : vector<8x1xf32> to vector<8x8xf32>
    %100 = arith.subf %96, %99 : vector<8x8xf32>
    %101 = math.exp %100 : vector<8x8xf32>
    %cst_39 = arith.constant dense<0.000000e+00> : vector<8xf32>
    %102 = vector.multi_reduction <add>, %101, %cst_39 [1] : vector<8x8xf32> to vector<8xf32>
    %103 = vector.shape_cast %102 : vector<8xf32> to vector<8x1xf32>
    %104 = vector.broadcast %103 : vector<8x1xf32> to vector<8x8xf32>
    %105 = arith.divf %101, %104 : vector<8x8xf32>
    %cst_40 = arith.constant dense<0.000000e+00> : vector<8x8xf32>
    %106 = tpu.matmul %105, %95, %cst_40 {dimension_numbers = #tpu.dot_dimension_numbers<[1], [0], [0], [1], [0, 0, 1, 1], [], []>} : vector<8x8xf32>, vector<8x8xf32>, vector<8x8xf32> -> vector<8x8xf32>
    %c0_41 = arith.constant 0 : index
    %c0_42 = arith.constant 0 : index
    %107 = vector.load %arg3[%c0_41, %c0_42] : memref<32x32xf32, #tpu.memory_space<vmem>>, vector<8x32xf32>
    %cst_43 = arith.constant dense<0.000000e+00> : vector<8x32xf32>
    %108 = tpu.matmul %106, %107, %cst_43 {dimension_numbers = #tpu.dot_dimension_numbers<[1], [0], [0], [1], [0, 0, 1, 1], [], []>} : vector<8x8xf32>, vector<8x32xf32>, vector<8x32xf32> -> vector<8x32xf32>
    %109 = arith.addf %91, %108 : vector<8x32xf32>
    %110 = arith.addf %92, %105 : vector<8x8xf32>
    %111 = vector.extract_strided_slice %13 {offsets = [8, 8], sizes = [8, 8], strides = [1, 1]} : vector<16x96xf32> to vector<8x8xf32>
    %112 = vector.extract_strided_slice %13 {offsets = [8, 40], sizes = [8, 8], strides = [1, 1]} : vector<16x96xf32> to vector<8x8xf32>
    %113 = vector.extract_strided_slice %13 {offsets = [8, 72], sizes = [8, 8], strides = [1, 1]} : vector<16x96xf32> to vector<8x8xf32>
    %cst_44 = arith.constant dense<0.000000e+00> : vector<8x8xf32>
    %114 = tpu.matmul %111, %112, %cst_44 {dimension_numbers = #tpu.dot_dimension_numbers<[1], [1], [0], [0], [0, 0, 1, 0], [], []>} : vector<8x8xf32>, vector<8x8xf32>, vector<8x8xf32> -> vector<8x8xf32>
    %cst_45 = arith.constant dense<0xFF800000> : vector<8xf32>
    %115 = vector.multi_reduction <maximumf>, %114, %cst_45 [1] : vector<8x8xf32> to vector<8xf32>
    %116 = vector.shape_cast %115 : vector<8xf32> to vector<8x1xf32>
    %117 = vector.broadcast %116 : vector<8x1xf32> to vector<8x8xf32>
    %118 = arith.subf %114, %117 : vector<8x8xf32>
    %119 = math.exp %118 : vector<8x8xf32>
    %cst_46 = arith.constant dense<0.000000e+00> : vector<8xf32>
    %120 = vector.multi_reduction <add>, %119, %cst_46 [1] : vector<8x8xf32> to vector<8xf32>
    %121 = vector.shape_cast %120 : vector<8xf32> to vector<8x1xf32>
    %122 = vector.broadcast %121 : vector<8x1xf32> to vector<8x8xf32>
    %123 = arith.divf %119, %122 : vector<8x8xf32>
    %cst_47 = arith.constant dense<0.000000e+00> : vector<8x8xf32>
    %124 = tpu.matmul %123, %113, %cst_47 {dimension_numbers = #tpu.dot_dimension_numbers<[1], [0], [0], [1], [0, 0, 1, 1], [], []>} : vector<8x8xf32>, vector<8x8xf32>, vector<8x8xf32> -> vector<8x8xf32>
    %c8_48 = arith.constant 8 : index
    %c0_49 = arith.constant 0 : index
    %125 = vector.load %arg3[%c8_48, %c0_49] : memref<32x32xf32, #tpu.memory_space<vmem>>, vector<8x32xf32>
    %cst_50 = arith.constant dense<0.000000e+00> : vector<8x32xf32>
    %126 = tpu.matmul %124, %125, %cst_50 {dimension_numbers = #tpu.dot_dimension_numbers<[1], [0], [0], [1], [0, 0, 1, 1], [], []>} : vector<8x8xf32>, vector<8x32xf32>, vector<8x32xf32> -> vector<8x32xf32>
    %127 = arith.addf %109, %126 : vector<8x32xf32>
    %128 = arith.addf %110, %123 : vector<8x8xf32>
    %129 = vector.extract_strided_slice %13 {offsets = [8, 16], sizes = [8, 8], strides = [1, 1]} : vector<16x96xf32> to vector<8x8xf32>
    %130 = vector.extract_strided_slice %13 {offsets = [8, 48], sizes = [8, 8], strides = [1, 1]} : vector<16x96xf32> to vector<8x8xf32>
    %131 = vector.extract_strided_slice %13 {offsets = [8, 80], sizes = [8, 8], strides = [1, 1]} : vector<16x96xf32> to vector<8x8xf32>
    %cst_51 = arith.constant dense<0.000000e+00> : vector<8x8xf32>
    %132 = tpu.matmul %129, %130, %cst_51 {dimension_numbers = #tpu.dot_dimension_numbers<[1], [1], [0], [0], [0, 0, 1, 0], [], []>} : vector<8x8xf32>, vector<8x8xf32>, vector<8x8xf32> -> vector<8x8xf32>
    %cst_52 = arith.constant dense<0xFF800000> : vector<8xf32>
    %133 = vector.multi_reduction <maximumf>, %132, %cst_52 [1] : vector<8x8xf32> to vector<8xf32>
    %134 = vector.shape_cast %133 : vector<8xf32> to vector<8x1xf32>
    %135 = vector.broadcast %134 : vector<8x1xf32> to vector<8x8xf32>
    %136 = arith.subf %132, %135 : vector<8x8xf32>
    %137 = math.exp %136 : vector<8x8xf32>
    %cst_53 = arith.constant dense<0.000000e+00> : vector<8xf32>
    %138 = vector.multi_reduction <add>, %137, %cst_53 [1] : vector<8x8xf32> to vector<8xf32>
    %139 = vector.shape_cast %138 : vector<8xf32> to vector<8x1xf32>
    %140 = vector.broadcast %139 : vector<8x1xf32> to vector<8x8xf32>
    %141 = arith.divf %137, %140 : vector<8x8xf32>
    %cst_54 = arith.constant dense<0.000000e+00> : vector<8x8xf32>
    %142 = tpu.matmul %141, %131, %cst_54 {dimension_numbers = #tpu.dot_dimension_numbers<[1], [0], [0], [1], [0, 0, 1, 1], [], []>} : vector<8x8xf32>, vector<8x8xf32>, vector<8x8xf32> -> vector<8x8xf32>
    %c16_55 = arith.constant 16 : index
    %c0_56 = arith.constant 0 : index
    %143 = vector.load %arg3[%c16_55, %c0_56] : memref<32x32xf32, #tpu.memory_space<vmem>>, vector<8x32xf32>
    %cst_57 = arith.constant dense<0.000000e+00> : vector<8x32xf32>
    %144 = tpu.matmul %142, %143, %cst_57 {dimension_numbers = #tpu.dot_dimension_numbers<[1], [0], [0], [1], [0, 0, 1, 1], [], []>} : vector<8x8xf32>, vector<8x32xf32>, vector<8x32xf32> -> vector<8x32xf32>
    %145 = arith.addf %127, %144 : vector<8x32xf32>
    %146 = arith.addf %128, %141 : vector<8x8xf32>
    %147 = vector.extract_strided_slice %13 {offsets = [8, 24], sizes = [8, 8], strides = [1, 1]} : vector<16x96xf32> to vector<8x8xf32>
    %148 = vector.extract_strided_slice %13 {offsets = [8, 56], sizes = [8, 8], strides = [1, 1]} : vector<16x96xf32> to vector<8x8xf32>
    %149 = vector.extract_strided_slice %13 {offsets = [8, 88], sizes = [8, 8], strides = [1, 1]} : vector<16x96xf32> to vector<8x8xf32>
    %cst_58 = arith.constant dense<0.000000e+00> : vector<8x8xf32>
    %150 = tpu.matmul %147, %148, %cst_58 {dimension_numbers = #tpu.dot_dimension_numbers<[1], [1], [0], [0], [0, 0, 1, 0], [], []>} : vector<8x8xf32>, vector<8x8xf32>, vector<8x8xf32> -> vector<8x8xf32>
    %cst_59 = arith.constant dense<0xFF800000> : vector<8xf32>
    %151 = vector.multi_reduction <maximumf>, %150, %cst_59 [1] : vector<8x8xf32> to vector<8xf32>
    %152 = vector.shape_cast %151 : vector<8xf32> to vector<8x1xf32>
    %153 = vector.broadcast %152 : vector<8x1xf32> to vector<8x8xf32>
    %154 = arith.subf %150, %153 : vector<8x8xf32>
    %155 = math.exp %154 : vector<8x8xf32>
    %cst_60 = arith.constant dense<0.000000e+00> : vector<8xf32>
    %156 = vector.multi_reduction <add>, %155, %cst_60 [1] : vector<8x8xf32> to vector<8xf32>
    %157 = vector.shape_cast %156 : vector<8xf32> to vector<8x1xf32>
    %158 = vector.broadcast %157 : vector<8x1xf32> to vector<8x8xf32>
    %159 = arith.divf %155, %158 : vector<8x8xf32>
    %cst_61 = arith.constant dense<0.000000e+00> : vector<8x8xf32>
    %160 = tpu.matmul %159, %149, %cst_61 {dimension_numbers = #tpu.dot_dimension_numbers<[1], [0], [0], [1], [0, 0, 1, 1], [], []>} : vector<8x8xf32>, vector<8x8xf32>, vector<8x8xf32> -> vector<8x8xf32>
    %c24_62 = arith.constant 24 : index
    %c0_63 = arith.constant 0 : index
    %161 = vector.load %arg3[%c24_62, %c0_63] : memref<32x32xf32, #tpu.memory_space<vmem>>, vector<8x32xf32>
    %cst_64 = arith.constant dense<0.000000e+00> : vector<8x32xf32>
    %162 = tpu.matmul %160, %161, %cst_64 {dimension_numbers = #tpu.dot_dimension_numbers<[1], [0], [0], [1], [0, 0, 1, 1], [], []>} : vector<8x8xf32>, vector<8x32xf32>, vector<8x32xf32> -> vector<8x32xf32>
    %163 = arith.addf %145, %162 : vector<8x32xf32>
    %164 = arith.addf %146, %159 : vector<8x8xf32>
    %cst_65 = arith.constant 2.500000e-01 : f32
    %165 = vector.broadcast %cst_65 : f32 to vector<8x8xf32>
    %166 = arith.mulf %164, %165 : vector<8x8xf32>
    %c8_66 = arith.constant 8 : index
    %c0_67 = arith.constant 0 : index
    %167 = vector.load %arg8[%c8_66, %c0_67] : memref<16x8xf32, #tpu.memory_space<vmem>>, vector<8x8xf32>
    tpu.vector_store %arg8[%c8_66, %c0_67], %166 {strides = array<i32>} : memref<16x8xf32, #tpu.memory_space<vmem>>, vector<8x8xf32>,
    %168 = tpu.concatenate %86, %163 in 0 : vector<8x32xf32>, vector<8x32xf32> -> vector<16x32xf32>
    %169 = vector.broadcast %3 : vector<1x32xf32> to vector<16x32xf32>
    %170 = arith.addf %168, %169 : vector<16x32xf32>
    %171 = arith.addf %0, %170 : vector<16x32xf32>
    %cst_68 = arith.constant dense<0.000000e+00> : vector<16xf32>
    %172 = vector.multi_reduction <add>, %171, %cst_68 [1] : vector<16x32xf32> to vector<16xf32>
    %173 = vector.shape_cast %172 : vector<16xf32> to vector<16x1xf32>
    %cst_69 = arith.constant 3.200000e+01 : f32
    %174 = vector.broadcast %cst_69 : f32 to vector<16x1xf32>
    %175 = arith.divf %173, %174 : vector<16x1xf32>
    %176 = vector.broadcast %175 : vector<16x1xf32> to vector<16x32xf32>
    %177 = arith.subf %171, %176 : vector<16x32xf32>
    %178 = arith.mulf %177, %177 : vector<16x32xf32>
    %cst_70 = arith.constant dense<0.000000e+00> : vector<16xf32>
    %179 = vector.multi_reduction <add>, %178, %cst_70 [1] : vector<16x32xf32> to vector<16xf32>
    %180 = vector.shape_cast %179 : vector<16xf32> to vector<16x1xf32>
    %cst_71 = arith.constant 3.200000e+01 : f32
    %181 = vector.broadcast %cst_71 : f32 to vector<16x1xf32>
    %182 = arith.divf %180, %181 : vector<16x1xf32>
    %183 = vector.broadcast %175 : vector<16x1xf32> to vector<16x32xf32>
    %184 = arith.subf %171, %183 : vector<16x32xf32>
    %cst_72 = arith.constant 9.99999974E-6 : f32
    %185 = vector.broadcast %cst_72 : f32 to vector<16x1xf32>
    %186 = arith.addf %182, %185 : vector<16x1xf32>
    %187 = math.rsqrt %186 : vector<16x1xf32>
    %188 = vector.broadcast %187 : vector<16x1xf32> to vector<16x32xf32>
    %189 = arith.mulf %184, %188 : vector<16x32xf32>
    %190 = vector.broadcast %6 : vector<1x32xf32> to vector<16x32xf32>
    %191 = arith.mulf %189, %190 : vector<16x32xf32>
    %192 = vector.broadcast %7 : vector<1x32xf32> to vector<16x32xf32>
    %193 = arith.addf %191, %192 : vector<16x32xf32>
    %c0_73 = arith.constant 0 : index
    %c0_74 = arith.constant 0 : index
    %194 = vector.load %arg4[%c0_73, %c0_74] : memref<32x32xf32, #tpu.memory_space<vmem>>, vector<32x32xf32>
    %cst_75 = arith.constant dense<0.000000e+00> : vector<16x32xf32>
    %195 = tpu.matmul %193, %194, %cst_75 {dimension_numbers = #tpu.dot_dimension_numbers<[1], [0], [0], [1], [0, 0, 1, 1], [], []>} : vector<16x32xf32>, vector<32x32xf32>, vector<16x32xf32> -> vector<16x32xf32>
    %196 = vector.broadcast %4 : vector<1x32xf32> to vector<16x32xf32>
    %197 = arith.addf %195, %196 : vector<16x32xf32>
    %cst_76 = arith.constant 0.000000e+00 : f32
    %198 = vector.broadcast %cst_76 : f32 to vector<16x32xf32>
    %199 = arith.maximumf %197, %198 : vector<16x32xf32>
    %c0_77 = arith.constant 0 : index
    %c0_78 = arith.constant 0 : index
    %200 = vector.load %arg5[%c0_77, %c0_78] : memref<32x32xf32, #tpu.memory_space<vmem>>, vector<32x32xf32>
    %cst_79 = arith.constant dense<0.000000e+00> : vector<16x32xf32>
    %201 = tpu.matmul %199, %200, %cst_79 {dimension_numbers = #tpu.dot_dimension_numbers<[1], [0], [0], [1], [0, 0, 1, 1], [], []>} : vector<16x32xf32>, vector<32x32xf32>, vector<16x32xf32> -> vector<16x32xf32>
    %202 = vector.broadcast %5 : vector<1x32xf32> to vector<16x32xf32>
    %203 = arith.addf %201, %202 : vector<16x32xf32>
    %204 = arith.addf %193, %203 : vector<16x32xf32>
    %cst_80 = arith.constant dense<0.000000e+00> : vector<16xf32>
    %205 = vector.multi_reduction <add>, %204, %cst_80 [1] : vector<16x32xf32> to vector<16xf32>
    %206 = vector.shape_cast %205 : vector<16xf32> to vector<16x1xf32>
    %cst_81 = arith.constant 3.200000e+01 : f32
    %207 = vector.broadcast %cst_81 : f32 to vector<16x1xf32>
    %208 = arith.divf %206, %207 : vector<16x1xf32>
    %209 = vector.broadcast %208 : vector<16x1xf32> to vector<16x32xf32>
    %210 = arith.subf %204, %209 : vector<16x32xf32>
    %211 = arith.mulf %210, %210 : vector<16x32xf32>
    %cst_82 = arith.constant dense<0.000000e+00> : vector<16xf32>
    %212 = vector.multi_reduction <add>, %211, %cst_82 [1] : vector<16x32xf32> to vector<16xf32>
    %213 = vector.shape_cast %212 : vector<16xf32> to vector<16x1xf32>
    %cst_83 = arith.constant 3.200000e+01 : f32
    %214 = vector.broadcast %cst_83 : f32 to vector<16x1xf32>
    %215 = arith.divf %213, %214 : vector<16x1xf32>
    %216 = vector.broadcast %208 : vector<16x1xf32> to vector<16x32xf32>
    %217 = arith.subf %204, %216 : vector<16x32xf32>
    %cst_84 = arith.constant 9.99999974E-6 : f32
    %218 = vector.broadcast %cst_84 : f32 to vector<16x1xf32>
    %219 = arith.addf %215, %218 : vector<16x1xf32>
    %220 = math.rsqrt %219 : vector<16x1xf32>
    %221 = vector.broadcast %220 : vector<16x1xf32> to vector<16x32xf32>
    %222 = arith.mulf %217, %221 : vector<16x32xf32>
    %223 = vector.broadcast %8 : vector<1x32xf32> to vector<16x32xf32>
    %224 = arith.mulf %222, %223 : vector<16x32xf32>
    %225 = vector.broadcast %9 : vector<1x32xf32> to vector<16x32xf32>
    %226 = arith.addf %224, %225 : vector<16x32xf32>
    %c0_85 = arith.constant 0 : index
    %c0_86 = arith.constant 0 : index
    %227 = vector.load %arg7[%c0_85, %c0_86] : memref<16x32xf32, #tpu.memory_space<vmem>>, vector<16x32xf32>
    tpu.vector_store %arg7[%c0_85, %c0_86], %226 {strides = array<i32>} : memref<16x32xf32, #tpu.memory_space<vmem>>, vector<16x32xf32>,
    return
  }
  func.func @transform_0(%arg0: i32) -> (i32, i32) {
    %c0_i32 = arith.constant 0 : i32
    %c0_i32_0 = arith.constant 0 : i32
    %c0_i32_1 = arith.constant 0 : i32
    return %c0_i32, %c0_i32_0 : i32, i32
  }
  func.func @transform_1(%arg0: i32) -> (i32, i32) {
    %c0_i32 = arith.constant 0 : i32
    %c0_i32_0 = arith.constant 0 : i32
    %c0_i32_1 = arith.constant 0 : i32
    return %c0_i32, %c0_i32_0 : i32, i32
  }
  func.func @transform_2(%arg0: i32) -> (i32, i32) {
    %c0_i32 = arith.constant 0 : i32
    %c0_i32_0 = arith.constant 0 : i32
    %c0_i32_1 = arith.constant 0 : i32
    return %c0_i32, %c0_i32_0 : i32, i32
  }
  func.func @transform_3(%arg0: i32) -> (i32, i32) {
    %c0_i32 = arith.constant 0 : i32
    %c0_i32_0 = arith.constant 0 : i32
    %c0_i32_1 = arith.constant 0 : i32
    return %c0_i32, %c0_i32_0 : i32, i32
  }
  func.func @transform_4(%arg0: i32) -> (i32, i32) {
    %c0_i32 = arith.constant 0 : i32
    %c0_i32_0 = arith.constant 0 : i32
    %c0_i32_1 = arith.constant 0 : i32
    return %c0_i32, %c0_i32_0 : i32, i32
  }
  func.func @transform_5(%arg0: i32) -> (i32, i32) {
    %c0_i32 = arith.constant 0 : i32
    %c0_i32_0 = arith.constant 0 : i32
    %c0_i32_1 = arith.constant 0 : i32
    return %c0_i32, %c0_i32_0 : i32, i32
  }
  func.func @transform_6(%arg0: i32) -> (i32, i32) {
    %c0_i32 = arith.constant 0 : i32
    %c0_i32_0 = arith.constant 0 : i32
    %c0_i32_1 = arith.constant 0 : i32
    return %c0_i32, %c0_i32_0 : i32, i32
  }
  func.func @transform_7(%arg0: i32) -> (i32, i32) {
    %c0_i32 = arith.constant 0 : i32
    %c0_i32_0 = arith.constant 0 : i32
    %c0_i32_1 = arith.constant 0 : i32
    return %c0_i32, %c0_i32_0 : i32, i32
  }
}

</mosaic_0001>

<llo_original>
// kernel: self_attn_layer.1
$region0: #{self_attn_layer.1}
  #allocation0 [shape = 'u32[]', space=smem, size = 0x4, offset = 0x4, fixed_abs, tag = 'smem constant byte address 0x4 - core index']
  #allocation1 [shape = 'u32[144,128]{1,0:T(1,128)}', space=vmem, size = 0x12000, scoped, tag = 'internal scratch']
  %s0 = inlined_call_operand.hbm [shape: f32[16,32], index: 0, kind: input, shape index: {}]
  %s1 = inlined_call_operand.hbm [shape: f32[32,96], index: 1, kind: input, shape index: {}]
  %s2 = inlined_call_operand.hbm [shape: f32[32,32], index: 2, kind: input, shape index: {}]
  %s3 = inlined_call_operand.hbm [shape: f32[32,32], index: 3, kind: input, shape index: {}]
  %s4 = inlined_call_operand.hbm [shape: f32[32,32], index: 4, kind: input, shape index: {}]
  %s5 = inlined_call_operand.hbm [shape: f32[8,96], index: 5, kind: input, shape index: {}]
  %s6 = inlined_call_operand.hbm [shape: f32[16,32], index: 6, kind: output, shape index: {0}]
  %s7 = inlined_call_operand.hbm [shape: f32[16,8], index: 7, kind: output, shape index: {1}]
  %8 = xla_tuple %s6, %s7
  %s9 = sld [smem:[#allocation0]]
  $region66: #{self_attn_layer.1} parent=0
    _
  %s11 = ssub.s32 1, %s9
  %s12 = scalar_select 0, %s11, %s9
  $region1: #{self_attn_layer.1} parent=0
    #allocation2 [shape = 'u8[8192]{0}', space=vmem, size = 0x2000, scoped, tag = 'input window, operand 0, single buffered']
    #allocation3 [shape = 's32[1]{0}', space=sflag, size = 0x4, scoped, tag = 'scoped memory for self_attn_layer.1']
    #allocation4 [shape = 's32[1]{0}', space=sflag, size = 0x4, scoped, tag = 'scoped memory for self_attn_layer.1']
    #allocation5 [shape = 'u8[16384]{0}', space=vmem, size = 0x4000, scoped, tag = 'input window, operand 1, single buffered']
    #allocation6 [shape = 's32[1]{0}', space=sflag, size = 0x4, scoped, tag = 'scoped memory for self_attn_layer.1']
    #allocation7 [shape = 'u8[16384]{0}', space=vmem, size = 0x4000, scoped, tag = 'input window, operand 2, single buffered']
    #allocation8 [shape = 'u8[16384]{0}', space=vmem, size = 0x4000, scoped, tag = 'input window, operand 3, single buffered']
    #allocation9 [shape = 's32[1]{0}', space=sflag, size = 0x4, scoped, tag = 'scoped memory for self_attn_layer.1']
    #allocation10 [shape = 'u8[16384]{0}', space=vmem, size = 0x4000, scoped, tag = 'input window, operand 4, single buffered']
    #allocation11 [shape = 'u8[4096]{0}', space=vmem, size = 0x1000, scoped, tag = 'input window, operand 5, single buffered']
    #allocation12 [shape = 's32[1]{0}', space=sflag, size = 0x4, scoped, tag = 'scoped memory for self_attn_layer.1']
    #allocation13 [shape = 'u8[8192]{0}', space=vmem, size = 0x2000, scoped, tag = 'output window, operand 0, single buffered']
    #allocation14 [shape = 'u8[8192]{0}', space=vmem, size = 0x2000, scoped, tag = 'output window, operand 1, single buffered']
    #allocation15 [shape = 's32[1]{0}', space=sflag, size = 0x4, scoped, tag = 'scoped memory for self_attn_layer.1']
    %13 = vsyncpa [#allocation3], 0
    %14 = vsyncpa [#allocation6], 0
    %15 = vsyncpa [#allocation9], 0
    %16 = vsyncpa [#allocation12], 0
    %17 = vsyncpa [#allocation4], 0
    %18 = vsyncpa [#allocation15], 0
    // Predicated region
    $region2: #{self_attn_layer.1} parent=1 // pred_check
      _
    $region3: #{self_attn_layer.1} parent=1 // pred_check_branch
      %20 = sbr.rel (0) target = $region5
    $region4: #{self_attn_layer.1} parent=1 // pred_region
      %s22 = ssub.s32 256, 256
      %23 = vsyncadd [#allocation3], %s22
      %s24 = sshll.u32 [#allocation2], 4
      %s25 = int_to_ptr.vmem [resolvable:$true] %s24
      %30 = dma.hbm_to_vmem [thread:$0]  %s0, 256, %s25, [#allocation3], 128, 128, 8
    $region5: #{self_attn_layer.1} parent=1 // pred_fallthru
      _
    // Predicated region
    $region6: #{self_attn_layer.1} parent=1 // pred_check
      _
    $region7: #{self_attn_layer.1} parent=1 // pred_check_branch
      %32 = sbr.rel (0) target = $region9
    $region8: #{self_attn_layer.1} parent=1 // pred_region
      %s34 = ssub.s32 512, 512
      %35 = vsyncadd [#allocation6], %s34
      %s36 = sshll.u32 [#allocation5], 4
      %s37 = int_to_ptr.vmem [resolvable:$true] %s36
      %42 = dma.hbm_to_vmem [thread:$0]  %s1, 512, %s37, [#allocation6], 128, 128, 8
    $region9: #{self_attn_layer.1} parent=1 // pred_fallthru
      _
    // Predicated region
    $region10: #{self_attn_layer.1} parent=1 // pred_check
      _
    $region11: #{self_attn_layer.1} parent=1 // pred_check_branch
      %44 = sbr.rel (0) target = $region13
    $region12: #{self_attn_layer.1} parent=1 // pred_region
      %s46 = ssub.s32 512, 512
      %47 = vsyncadd [#allocation6], %s46
      %s48 = sshll.u32 [#allocation7], 4
      %s49 = int_to_ptr.vmem [resolvable:$true] %s48
      %54 = dma.hbm_to_vmem [thread:$0]  %s2, 512, %s49, [#allocation6], 128, 128, 8
    $region13: #{self_attn_layer.1} parent=1 // pred_fallthru
      _
    // Predicated region
    $region14: #{self_attn_layer.1} parent=1 // pred_check
      _
    $region15: #{self_attn_layer.1} parent=1 // pred_check_branch
      %56 = sbr.rel (0) target = $region17
    $region16: #{self_attn_layer.1} parent=1 // pred_region
      %s58 = ssub.s32 512, 512
      %59 = vsyncadd [#allocation9], %s58
      %s60 = sshll.u32 [#allocation8], 4
      %s61 = int_to_ptr.vmem [resolvable:$true] %s60
      %66 = dma.hbm_to_vmem [thread:$0]  %s3, 512, %s61, [#allocation9], 128, 128, 8
    $region17: #{self_attn_layer.1} parent=1 // pred_fallthru
      _
    // Predicated region
    $region18: #{self_attn_layer.1} parent=1 // pred_check
      _
    $region19: #{self_attn_layer.1} parent=1 // pred_check_branch
      %68 = sbr.rel (0) target = $region21
    $region20: #{self_attn_layer.1} parent=1 // pred_region
      %s70 = ssub.s32 512, 512
      %71 = vsyncadd [#allocation9], %s70
      %s72 = sshll.u32 [#allocation10], 4
      %s73 = int_to_ptr.vmem [resolvable:$true] %s72
      %78 = dma.hbm_to_vmem [thread:$0]  %s4, 512, %s73, [#allocation9], 128, 128, 8
    $region21: #{self_attn_layer.1} parent=1 // pred_fallthru
      _
    // Predicated region
    $region22: #{self_attn_layer.1} parent=1 // pred_check
      _
    $region23: #{self_attn_layer.1} parent=1 // pred_check_branch
      %80 = sbr.rel (0) target = $region25
    $region24: #{self_attn_layer.1} parent=1 // pred_region
      %s82 = ssub.s32 128, 128
      %83 = vsyncadd [#allocation12], %s82
      %s85 = sshll.u32 [#allocation11], 4
      %s86 = int_to_ptr.vmem [resolvable:$true] %s85
      %88 = dma.hbm_to_vmem [thread:$0]  %s5, 128, %s86, [#allocation12]
    $region25: #{self_attn_layer.1} parent=1 // pred_fallthru
      _
    // Predicated region
    $region26: #{self_attn_layer.1} parent=1 // pred_check
      _
    $region27: #{self_attn_layer.1} parent=1 // pred_check_branch
      %90 = sbr.rel (0) target = $region29
    $region28: #{self_attn_layer.1} parent=1 // pred_region
      %91 = dma.done [#allocation3], 256
    $region29: #{self_attn_layer.1} parent=1 // pred_fallthru
      _
    // Predicated region
    $region30: #{self_attn_layer.1} parent=1 // pred_check
      _
    $region31: #{self_attn_layer.1} parent=1 // pred_check_branch
      %93 = sbr.rel (0) target = $region33
    $region32: #{self_attn_layer.1} parent=1 // pred_region
      %94 = dma.done [#allocation6], 512
    $region33: #{self_attn_layer.1} parent=1 // pred_fallthru
      _
    // Predicated region
    $region34: #{self_attn_layer.1} parent=1 // pred_check
      _
    $region35: #{self_attn_layer.1} parent=1 // pred_check_branch
      %96 = sbr.rel (0) target = $region37
    $region36: #{self_attn_layer.1} parent=1 // pred_region
      %97 = dma.done [#allocation6], 512
    $region37: #{self_attn_layer.1} parent=1 // pred_fallthru
      _
    // Predicated region
    $region38: #{self_attn_layer.1} parent=1 // pred_check
      _
    $region39: #{self_attn_layer.1} parent=1 // pred_check_branch
      %99 = sbr.rel (0) target = $region41
    $region40: #{self_attn_layer.1} parent=1 // pred_region
      %100 = dma.done [#allocation9], 512
    $region41: #{self_attn_layer.1} parent=1 // pred_fallthru
      _
    // Predicated region
    $region42: #{self_attn_layer.1} parent=1 // pred_check
      _
    $region43: #{self_attn_layer.1} parent=1 // pred_check_branch
      %102 = sbr.rel (0) target = $region45
    $region44: #{self_attn_layer.1} parent=1 // pred_region
      %103 = dma.done [#allocation9], 512
    $region45: #{self_attn_layer.1} parent=1 // pred_fallthru
      _
    // Predicated region
    $region46: #{self_attn_layer.1} parent=1 // pred_check
      _
    $region47: #{self_attn_layer.1} parent=1 // pred_check_branch
      %105 = sbr.rel (0) target = $region49
    $region48: #{self_attn_layer.1} parent=1 // pred_region
      %106 = dma.done [#allocation12], 128
    $region49: #{self_attn_layer.1} parent=1 // pred_fallthru
      _
    %v107 = vld [vmem:[#allocation2] sm:$0xff]
    %v108 = vld [vmem:[#allocation2 + $0x8] sm:$0xff]
    %v109 = vld [vmem:[#allocation11] sm:$0xff]
    %v110 = vld [vmem:[#allocation5] sm:$0xff]
    %v111 = vld [vmem:[#allocation5 + $0x8] sm:$0xff]
    %v112 = vld [vmem:[#allocation5 + $0x10] sm:$0xff]
    %v113 = vld [vmem:[#allocation5 + $0x18] sm:$0xff]
    %v114 = vlaneseq
    %v115 = vshrl.u32 %v114, 7
    %v116 = vsub.s32 0, %v115
    %v117 = vrot.slane %v109, %v116
    %vm118 = vcmask 261120
    %v120 = vsel %vm118, %v107, 0
    %v123 = vsel %vm118, %v108, 0
    %125 = vmatprep.subr.mxu0 0.0
    %126 = vmatpush1.msra.mxu0 %v110
    %127 = vmatprep.subr.mxu0 0.0
    %128 = vmatpush1.msra.mxu0 %v111
    %129 = vmatprep.subr.mxu0 0.0
    %130 = vmatpush1.msra.mxu0 %v112
    %131 = vmatprep.subr.mxu0 0.0
    %132 = vmatpush1.msra.mxu0 %v113
    %133 = vmatprep.subr.mxu0 0.0
    %134 = vmatpush1.msra.mxu0 0.0
    %135 = vmatprep.subr.mxu0 0.0
    %136 = vmatpush1.msra.mxu0 0.0
    %137 = vmatprep.subr.mxu0 0.0
    %138 = vmatpush1.msra.mxu0 0.0
    %139 = vmatprep.subr.mxu0 0.0
    %140 = vmatpush1.msra.mxu0 0.0
    %141 = vmatprep.subr.mxu0 0.0
    %142 = vmatpush1.msra.mxu0 0.0
    %143 = vmatprep.subr.mxu0 0.0
    %144 = vmatpush1.msra.mxu0 0.0
    %145 = vmatprep.subr.mxu0 0.0
    %146 = vmatpush1.msra.mxu0 0.0
    %147 = vmatprep.subr.mxu0 0.0
    %148 = vmatpush1.msra.mxu0 0.0
    %149 = vmatprep.subr.mxu0 0.0
    %150 = vmatpush1.msra.mxu0 0.0
    %151 = vmatprep.subr.mxu0 0.0
    %152 = vmatpush1.msra.mxu0 0.0
    %153 = vmatprep.subr.mxu0 0.0
    %154 = vmatpush1.msra.mxu0 0.0
    %155 = vmatprep.subr.mxu0 0.0
    %156 = vmatpush1.msra.mxu0 0.0
    %157 = vmatprep.subr.mxu0 0.0
    %158 = vmatpush1.msra.mxu0 0.0
    %159 = vmatprep.subr.mxu0 0.0
    %160 = vmatpush1.msra.mxu0 0.0
    %161 = vmatprep.subr.mxu0 0.0
    %162 = vmatpush1.msra.mxu0 0.0
    %163 = vmatprep.subr.mxu0 0.0
    %164 = vmatpush1.msra.mxu0 0.0
    %165 = vmatprep.subr.mxu0 0.0
    %166 = vmatpush1.msra.mxu0 0.0
    %167 = vmatprep.subr.mxu0 0.0
    %168 = vmatpush1.msra.mxu0 0.0
    %169 = vmatprep.subr.mxu0 0.0
    %170 = vmatpush1.msra.mxu0 0.0
    %171 = vmatprep.subr.mxu0 0.0
    %172 = vmatpush1.msra.mxu0 0.0
    %173 = vmatprep.subr.mxu0 0.0
    %174 = vmatpush1.msra.mxu0 0.0
    %175 = vmatprep.subr.mxu0 0.0
    %176 = vmatpush1.msra.mxu0 0.0
    %177 = vmatprep.subr.mxu0 0.0
    %178 = vmatpush1.msra.mxu0 0.0
    %179 = vmatprep.subr.mxu0 0.0
    %180 = vmatpush1.msra.mxu0 0.0
    %181 = vmatprep.subr.mxu0 0.0
    %182 = vmatpush1.msra.mxu0 0.0
    %183 = vmatprep.subr.mxu0 0.0
    %184 = vmatpush1.msra.mxu0 0.0
    %185 = vmatprep.subr.mxu0 0.0
    %186 = vmatpush1.msra.mxu0 0.0
    %187 = vmatprep.subr.mxu0 0.0
    %188 = vmatpush1.msra.mxu0 0.0
    %189 = vmatprep.mubr.f32.mxu0 0.0
    %190 = vmatmul.mubr.f32.gmra.mrb[0].mxu0 %v120
    %v191 = vpop.f32.mrb[0].mxu0
    %v192 = vadd.f32 %v117, %v191
    %v193 = vpop.f32.mrb[0].mxu0
    %194 = vmatprep.mubr.f32.mxu0 0.0
    %195 = vmatmul.mubr.f32.gmra.mrb[0].mxu0 %v123
    %v196 = vpop.f32.mrb[0].mxu0
    %v197 = vadd.f32 %v117, %v196
    %v198 = vpop.f32.mrb[0].mxu0
    %199 = vdwg.mxu0
    %201 = vrot.lane.b32.xlu0 %v192, 96
    %v202 = vpop.permute.xlu0 %201
    %vm203 = vcmask 64512
    %v204 = vsel %vm203, %v192, 0
    %v206 = vsel %vm203, %v202, 0
    %208 = vmatprep.subr.mxu0 0.0
    %209 = vmatpush1.xpose.msra.mxu0 %v206
    %210 = vmatprep.subr.mxu0 0.0
    %211 = vmatpush1.xpose.msra.mxu0 0.0
    %212 = vmatprep.subr.mxu0 0.0
    %213 = vmatpush1.xpose.msra.mxu0 0.0
    %214 = vmatprep.subr.mxu0 0.0
    %215 = vmatpush1.xpose.msra.mxu0 0.0
    %216 = vmatprep.subr.mxu0 0.0
    %217 = vmatpush1.xpose.msra.mxu0 0.0
    %218 = vmatprep.subr.mxu0 0.0
    %219 = vmatpush1.xpose.msra.mxu0 0.0
    %220 = vmatprep.subr.mxu0 0.0
    %221 = vmatpush1.xpose.msra.mxu0 0.0
    %222 = vmatprep.subr.mxu0 0.0
    %223 = vmatpush1.xpose.msra.mxu0 0.0
    %224 = vmatprep.subr.mxu0 0.0
    %225 = vmatpush1.xpose.msra.mxu0 0.0
    %226 = vmatprep.subr.mxu0 0.0
    %227 = vmatpush1.xpose.msra.mxu0 0.0
    %228 = vmatprep.subr.mxu0 0.0
    %229 = vmatpush1.xpose.msra.mxu0 0.0
    %230 = vmatprep.subr.mxu0 0.0
    %231 = vmatpush1.xpose.msra.mxu0 0.0
    %232 = vmatprep.subr.mxu0 0.0
    %233 = vmatpush1.xpose.msra.mxu0 0.0
    %234 = vmatprep.subr.mxu0 0.0
    %235 = vmatpush1.xpose.msra.mxu0 0.0
    %236 = vmatprep.subr.mxu0 0.0
    %237 = vmatpush1.xpose.msra.mxu0 0.0
    %238 = vmatprep.subr.mxu0 0.0
    %239 = vmatpush1.xpose.msra.mxu0 0.0
    %240 = vmatprep.subr.mxu0 0.0
    %241 = vmatpush1.xpose.msra.mxu0 0.0
    %242 = vmatprep.subr.mxu0 0.0
    %243 = vmatpush1.xpose.msra.mxu0 0.0
    %244 = vmatprep.subr.mxu0 0.0
    %245 = vmatpush1.xpose.msra.mxu0 0.0
    %246 = vmatprep.subr.mxu0 0.0
    %247 = vmatpush1.xpose.msra.mxu0 0.0
    %248 = vmatprep.subr.mxu0 0.0
    %249 = vmatpush1.xpose.msra.mxu0 0.0
    %250 = vmatprep.subr.mxu0 0.0
    %251 = vmatpush1.xpose.msra.mxu0 0.0
    %252 = vmatprep.subr.mxu0 0.0
    %253 = vmatpush1.xpose.msra.mxu0 0.0
    %254 = vmatprep.subr.mxu0 0.0
    %255 = vmatpush1.xpose.msra.mxu0 0.0
    %256 = vmatprep.subr.mxu0 0.0
    %257 = vmatpush1.xpose.msra.mxu0 0.0
    %258 = vmatprep.subr.mxu0 0.0
    %259 = vmatpush1.xpose.msra.mxu0 0.0
    %260 = vmatprep.subr.mxu0 0.0
    %261 = vmatpush1.xpose.msra.mxu0 0.0
    %262 = vmatprep.subr.mxu0 0.0
    %263 = vmatpush1.xpose.msra.mxu0 0.0
    %264 = vmatprep.subr.mxu0 0.0
    %265 = vmatpush1.xpose.msra.mxu0 0.0
    %266 = vmatprep.subr.mxu0 0.0
    %267 = vmatpush1.xpose.msra.mxu0 0.0
    %268 = vmatprep.subr.mxu0 0.0
    %269 = vmatpush1.xpose.msra.mxu0 0.0
    %270 = vmatprep.subr.mxu0 0.0
    %271 = vmatpush1.xpose.msra.mxu0 0.0
    %272 = vmatprep.mubr.f32.mxu0 0.0
    %273 = vmatmul.mubr.f32.gmra.mrb[0].mxu0 %v204
    %v274 = vpop.f32.mrb[0].mxu0
    %v275 = vadd.f32 0.0, %v274
    %v276 = vpop.f32.mrb[0].mxu0
    %277 = vdwg.mxu0
    %v278 = vsel %vm203, %v275, -inf
    %279 = vmax.xlane.f32.xlu0 %v278
    %v280 = vpop.xlane.xlu0 %279
    %v281 = vsub.f32 %v275, %v280
    %v282 = vmul.f32 %v281, 1.442695
    %v283 = vpow.pop %v282
    %v284 = vsel %vm203, %v283, 0.0
    %285 = vadd.xlane.f32.xlu0 %v284
    %v286 = vpop.xlane.xlu0 %285
    %v287 = vrcp.pop %v286
    %v288 = vmul.f32 %v283, %v287
    %289 = vrot.lane.b32.xlu0 %v192, 64
    %v290 = vpop.permute.xlu0 %289
    %v293 = vsel %vm203, %v288, 0
    %295 = vmatprep.subr.mxu0 0.0
    %296 = vmatpush1.msra.mxu0 %v290
    %297 = vmatprep.subr.mxu0 0.0
    %298 = vmatpush1.msra.mxu0 0.0
    %299 = vmatprep.subr.mxu0 0.0
    %300 = vmatpush1.msra.mxu0 0.0
    %301 = vmatprep.subr.mxu0 0.0
    %302 = vmatpush1.msra.mxu0 0.0
    %303 = vmatprep.subr.mxu0 0.0
    %304 = vmatpush1.msra.mxu0 0.0
    %305 = vmatprep.subr.mxu0 0.0
    %306 = vmatpush1.msra.mxu0 0.0
    %307 = vmatprep.subr.mxu0 0.0
    %308 = vmatpush1.msra.mxu0 0.0
    %309 = vmatprep.subr.mxu0 0.0
    %310 = vmatpush1.msra.mxu0 0.0
    %311 = vmatprep.subr.mxu0 0.0
    %312 = vmatpush1.msra.mxu0 0.0
    %313 = vmatprep.subr.mxu0 0.0
    %314 = vmatpush1.msra.mxu0 0.0
    %315 = vmatprep.subr.mxu0 0.0
    %316 = vmatpush1.msra.mxu0 0.0
    %317 = vmatprep.subr.mxu0 0.0
    %318 = vmatpush1.msra.mxu0 0.0
    %319 = vmatprep.subr.mxu0 0.0
    %320 = vmatpush1.msra.mxu0 0.0
    %321 = vmatprep.subr.mxu0 0.0
    %322 = vmatpush1.msra.mxu0 0.0
    %323 = vmatprep.subr.mxu0 0.0
    %324 = vmatpush1.msra.mxu0 0.0
    %325 = vmatprep.subr.mxu0 0.0
    %326 = vmatpush1.msra.mxu0 0.0
    %327 = vmatprep.subr.mxu0 0.0
    %328 = vmatpush1.msra.mxu0 0.0
    %329 = vmatprep.subr.mxu0 0.0
    %330 = vmatpush1.msra.mxu0 0.0
    %331 = vmatprep.subr.mxu0 0.0
    %332 = vmatpush1.msra.mxu0 0.0
    %333 = vmatprep.subr.mxu0 0.0
    %334 = vmatpush1.msra.mxu0 0.0
    %335 = vmatprep.subr.mxu0 0.0
    %336 = vmatpush1.msra.mxu0 0.0
    %337 = vmatprep.subr.mxu0 0.0
    %338 = vmatpush1.msra.mxu0 0.0
    %339 = vmatprep.subr.mxu0 0.0
    %340 = vmatpush1.msra.mxu0 0.0
    %341 = vmatprep.subr.mxu0 0.0
    %342 = vmatpush1.msra.mxu0 0.0
    %343 = vmatprep.subr.mxu0 0.0
    %344 = vmatpush1.msra.mxu0 0.0
    %345 = vmatprep.subr.mxu0 0.0
    %346 = vmatpush1.msra.mxu0 0.0
    %347 = vmatprep.subr.mxu0 0.0
    %348 = vmatpush1.msra.mxu0 0.0
    %349 = vmatprep.subr.mxu0 0.0
    %350 = vmatpush1.msra.mxu0 0.0
    %351 = vmatprep.subr.mxu0 0.0
    %352 = vmatpush1.msra.mxu0 0.0
    %353 = vmatprep.subr.mxu0 0.0
    %354 = vmatpush1.msra.mxu0 0.0
    %355 = vmatprep.subr.mxu0 0.0
    %356 = vmatpush1.msra.mxu0 0.0
    %357 = vmatprep.subr.mxu0 0.0
    %358 = vmatpush1.msra.mxu0 0.0
    %359 = vmatprep.mubr.f32.mxu0 0.0
    %360 = vmatmul.mubr.f32.gmra.mrb[0].mxu0 %v293
    %v361 = vpop.f32.mrb[0].mxu0
    %v362 = vadd.f32 0.0, %v361
    %v363 = vpop.f32.mrb[0].mxu0
    %364 = vdwg.mxu0
    %v365 = vld [vmem:[#allocation7] sm:$0xff]
    %v366 = vadd.f32 %v288, 0.0
    %367 = vrot.lane.b32.xlu0 %v192, 120
    %v368 = vpop.permute.xlu0 %367
    %369 = vrot.lane.b32.xlu0 %v192, 88
    %v370 = vpop.permute.xlu0 %369
    %v371 = vsel %vm203, %v368, 0
    %v373 = vsel %vm203, %v370, 0
    %375 = vmatprep.subr.mxu0 0.0
    %376 = vmatpush1.xpose.msra.mxu0 %v373
    %377 = vmatprep.subr.mxu0 0.0
    %378 = vmatpush1.xpose.msra.mxu0 0.0
    %379 = vmatprep.subr.mxu0 0.0
    %380 = vmatpush1.xpose.msra.mxu0 0.0
    %381 = vmatprep.subr.mxu0 0.0
    %382 = vmatpush1.xpose.msra.mxu0 0.0
    %383 = vmatprep.subr.mxu0 0.0
    %384 = vmatpush1.xpose.msra.mxu0 0.0
    %385 = vmatprep.subr.mxu0 0.0
    %386 = vmatpush1.xpose.msra.mxu0 0.0
    %387 = vmatprep.subr.mxu0 0.0
    %388 = vmatpush1.xpose.msra.mxu0 0.0
    %389 = vmatprep.subr.mxu0 0.0
    %390 = vmatpush1.xpose.msra.mxu0 0.0
    %391 = vmatprep.subr.mxu0 0.0
    %392 = vmatpush1.xpose.msra.mxu0 0.0
    %393 = vmatprep.subr.mxu0 0.0
    %394 = vmatpush1.xpose.msra.mxu0 0.0
    %395 = vmatprep.subr.mxu0 0.0
    %396 = vmatpush1.xpose.msra.mxu0 0.0
    %397 = vmatprep.subr.mxu0 0.0
    %398 = vmatpush1.xpose.msra.mxu0 0.0
    %399 = vmatprep.subr.mxu0 0.0
    %400 = vmatpush1.xpose.msra.mxu0 0.0
    %401 = vmatprep.subr.mxu0 0.0
    %402 = vmatpush1.xpose.msra.mxu0 0.0
    %403 = vmatprep.subr.mxu0 0.0
    %404 = vmatpush1.xpose.msra.mxu0 0.0
    %405 = vmatprep.subr.mxu0 0.0
    %406 = vmatpush1.xpose.msra.mxu0 0.0
    %407 = vmatprep.subr.mxu0 0.0
    %408 = vmatpush1.xpose.msra.mxu0 0.0
    %409 = vmatprep.subr.mxu0 0.0
    %410 = vmatpush1.xpose.msra.mxu0 0.0
    %411 = vmatprep.subr.mxu0 0.0
    %412 = vmatpush1.xpose.msra.mxu0 0.0
    %413 = vmatprep.subr.mxu0 0.0
    %414 = vmatpush1.xpose.msra.mxu0 0.0
    %415 = vmatprep.subr.mxu0 0.0
    %416 = vmatpush1.xpose.msra.mxu0 0.0
    %417 = vmatprep.subr.mxu0 0.0
    %418 = vmatpush1.xpose.msra.mxu0 0.0
    %419 = vmatprep.subr.mxu0 0.0
    %420 = vmatpush1.xpose.msra.mxu0 0.0
    %421 = vmatprep.subr.mxu0 0.0
    %422 = vmatpush1.xpose.msra.mxu0 0.0
    %423 = vmatprep.subr.mxu0 0.0
    %424 = vmatpush1.xpose.msra.mxu0 0.0
    %425 = vmatprep.subr.mxu0 0.0
    %426 = vmatpush1.xpose.msra.mxu0 0.0
    %427 = vmatprep.subr.mxu0 0.0
    %428 = vmatpush1.xpose.msra.mxu0 0.0
    %429 = vmatprep.subr.mxu0 0.0
    %430 = vmatpush1.xpose.msra.mxu0 0.0
    %431 = vmatprep.subr.mxu0 0.0
    %432 = vmatpush1.xpose.msra.mxu0 0.0
    %433 = vmatprep.subr.mxu0 0.0
    %434 = vmatpush1.xpose.msra.mxu0 0.0
    %435 = vmatprep.subr.mxu0 0.0
    %436 = vmatpush1.xpose.msra.mxu0 0.0
    %437 = vmatprep.subr.mxu0 0.0
    %438 = vmatpush1.xpose.msra.mxu0 0.0
    %439 = vmatprep.mubr.f32.mxu0 0.0
    %440 = vmatmul.mubr.f32.gmra.mrb[0].mxu0 %v371
    %v441 = vpop.f32.mrb[0].mxu0
    %v442 = vadd.f32 0.0, %v441
    %v443 = vpop.f32.mrb[0].mxu0
    %444 = vdwg.mxu0
    %v445 = vsel %vm203, %v442, -inf
    %446 = vmax.xlane.f32.xlu0 %v445
    %v447 = vpop.xlane.xlu0 %446
    %v448 = vsub.f32 %v442, %v447
    %v449 = vmul.f32 %v448, 1.442695
    %v450 = vpow.pop %v449
    %v451 = vsel %vm203, %v450, 0.0
    %452 = vadd.xlane.f32.xlu0 %v451
    %v453 = vpop.xlane.xlu0 %452
    %v454 = vrcp.pop %v453
    %v455 = vmul.f32 %v450, %v454
    %456 = vrot.lane.b32.xlu0 %v192, 56
    %v457 = vpop.permute.xlu0 %456
    %v460 = vsel %vm203, %v455, 0
    %462 = vmatprep.subr.mxu0 0.0
    %463 = vmatpush1.msra.mxu0 %v457
    %464 = vmatprep.subr.mxu0 0.0
    %465 = vmatpush1.msra.mxu0 0.0
    %466 = vmatprep.subr.mxu0 0.0
    %467 = vmatpush1.msra.mxu0 0.0
    %468 = vmatprep.subr.mxu0 0.0
    %469 = vmatpush1.msra.mxu0 0.0
    %470 = vmatprep.subr.mxu0 0.0
    %471 = vmatpush1.msra.mxu0 0.0
    %472 = vmatprep.subr.mxu0 0.0
    %473 = vmatpush1.msra.mxu0 0.0
    %474 = vmatprep.subr.mxu0 0.0
    %475 = vmatpush1.msra.mxu0 0.0
    %476 = vmatprep.subr.mxu0 0.0
    %477 = vmatpush1.msra.mxu0 0.0
    %478 = vmatprep.subr.mxu0 0.0
    %479 = vmatpush1.msra.mxu0 0.0
    %480 = vmatprep.subr.mxu0 0.0
    %481 = vmatpush1.msra.mxu0 0.0
    %482 = vmatprep.subr.mxu0 0.0
    %483 = vmatpush1.msra.mxu0 0.0
    %484 = vmatprep.subr.mxu0 0.0
    %485 = vmatpush1.msra.mxu0 0.0
    %486 = vmatprep.subr.mxu0 0.0
    %487 = vmatpush1.msra.mxu0 0.0
    %488 = vmatprep.subr.mxu0 0.0
    %489 = vmatpush1.msra.mxu0 0.0
    %490 = vmatprep.subr.mxu0 0.0
    %491 = vmatpush1.msra.mxu0 0.0
    %492 = vmatprep.subr.mxu0 0.0
    %493 = vmatpush1.msra.mxu0 0.0
    %494 = vmatprep.subr.mxu0 0.0
    %495 = vmatpush1.msra.mxu0 0.0
    %496 = vmatprep.subr.mxu0 0.0
    %497 = vmatpush1.msra.mxu0 0.0
    %498 = vmatprep.subr.mxu0 0.0
    %499 = vmatpush1.msra.mxu0 0.0
    %500 = vmatprep.subr.mxu0 0.0
    %501 = vmatpush1.msra.mxu0 0.0
    %502 = vmatprep.subr.mxu0 0.0
    %503 = vmatpush1.msra.mxu0 0.0
    %504 = vmatprep.subr.mxu0 0.0
    %505 = vmatpush1.msra.mxu0 0.0
    %506 = vmatprep.subr.mxu0 0.0
    %507 = vmatpush1.msra.mxu0 0.0
    %508 = vmatprep.subr.mxu0 0.0
    %509 = vmatpush1.msra.mxu0 0.0
    %510 = vmatprep.subr.mxu0 0.0
    %511 = vmatpush1.msra.mxu0 0.0
    %512 = vmatprep.subr.mxu0 0.0
    %513 = vmatpush1.msra.mxu0 0.0
    %514 = vmatprep.subr.mxu0 0.0
    %515 = vmatpush1.msra.mxu0 0.0
    %516 = vmatprep.subr.mxu0 0.0
    %517 = vmatpush1.msra.mxu0 0.0
    %518 = vmatprep.subr.mxu0 0.0
    %519 = vmatpush1.msra.mxu0 0.0
    %520 = vmatprep.subr.mxu0 0.0
    %521 = vmatpush1.msra.mxu0 0.0
    %522 = vmatprep.subr.mxu0 0.0
    %523 = vmatpush1.msra.mxu0 0.0
    %524 = vmatprep.subr.mxu0 0.0
    %525 = vmatpush1.msra.mxu0 0.0
    %526 = vmatprep.mubr.f32.mxu0 0.0
    %527 = vmatmul.mubr.f32.gmra.mrb[0].mxu0 %v460
    %v528 = vpop.f32.mrb[0].mxu0
    %v529 = vadd.f32 0.0, %v528
    %v530 = vpop.f32.mrb[0].mxu0
    %531 = vdwg.mxu0
    %v532 = vld [vmem:[#allocation7 + $0x8] sm:$0xff]
    %v534 = vsel %vm203, %v529, 0
    %536 = vmatprep.subr.mxu0 0.0
    %537 = vmatpush1.msra.mxu0 %v532
    %538 = vmatprep.subr.mxu0 0.0
    %539 = vmatpush1.msra.mxu0 0.0
    %540 = vmatprep.subr.mxu0 0.0
    %541 = vmatpush1.msra.mxu0 0.0
    %542 = vmatprep.subr.mxu0 0.0
    %543 = vmatpush1.msra.mxu0 0.0
    %544 = vmatprep.subr.mxu0 0.0
    %545 = vmatpush1.msra.mxu0 0.0
    %546 = vmatprep.subr.mxu0 0.0
    %547 = vmatpush1.msra.mxu0 0.0
    %548 = vmatprep.subr.mxu0 0.0
    %549 = vmatpush1.msra.mxu0 0.0
    %550 = vmatprep.subr.mxu0 0.0
    %551 = vmatpush1.msra.mxu0 0.0
    %552 = vmatprep.subr.mxu0 0.0
    %553 = vmatpush1.msra.mxu0 0.0
    %554 = vmatprep.subr.mxu0 0.0
    %555 = vmatpush1.msra.mxu0 0.0
    %556 = vmatprep.subr.mxu0 0.0
    %557 = vmatpush1.msra.mxu0 0.0
    %558 = vmatprep.subr.mxu0 0.0
    %559 = vmatpush1.msra.mxu0 0.0
    %560 = vmatprep.subr.mxu0 0.0
    %561 = vmatpush1.msra.mxu0 0.0
    %562 = vmatprep.subr.mxu0 0.0
    %563 = vmatpush1.msra.mxu0 0.0
    %564 = vmatprep.subr.mxu0 0.0
    %565 = vmatpush1.msra.mxu0 0.0
    %566 = vmatprep.subr.mxu0 0.0
    %567 = vmatpush1.msra.mxu0 0.0
    %568 = vmatprep.subr.mxu0 0.0
    %569 = vmatpush1.msra.mxu0 0.0
    %570 = vmatprep.subr.mxu0 0.0
    %571 = vmatpush1.msra.mxu0 0.0
    %572 = vmatprep.subr.mxu0 0.0
    %573 = vmatpush1.msra.mxu0 0.0
    %574 = vmatprep.subr.mxu0 0.0
    %575 = vmatpush1.msra.mxu0 0.0
    %576 = vmatprep.subr.mxu0 0.0
    %577 = vmatpush1.msra.mxu0 0.0
    %578 = vmatprep.subr.mxu0 0.0
    %579 = vmatpush1.msra.mxu0 0.0
    %580 = vmatprep.subr.mxu0 0.0
    %581 = vmatpush1.msra.mxu0 0.0
    %582 = vmatprep.subr.mxu0 0.0
    %583 = vmatpush1.msra.mxu0 0.0
    %584 = vmatprep.subr.mxu0 0.0
    %585 = vmatpush1.msra.mxu0 0.0
    %586 = vmatprep.subr.mxu0 0.0
    %587 = vmatpush1.msra.mxu0 0.0
    %588 = vmatprep.subr.mxu0 0.0
    %589 = vmatpush1.msra.mxu0 0.0
    %590 = vmatprep.subr.mxu0 0.0
    %591 = vmatpush1.msra.mxu0 0.0
    %592 = vmatprep.subr.mxu0 0.0
    %593 = vmatpush1.msra.mxu0 0.0
    %594 = vmatprep.subr.mxu0 0.0
    %595 = vmatpush1.msra.mxu0 0.0
    %596 = vmatprep.subr.mxu0 0.0
    %597 = vmatpush1.msra.mxu0 0.0
    %598 = vmatprep.subr.mxu0 0.0
    %599 = vmatpush1.msra.mxu0 0.0
    %600 = vmatprep.mubr.f32.mxu0 0.0
    %601 = vmatmul.mubr.f32.gmra.mrb[0].mxu0 %v534
    %v602 = vpop.f32.mrb[0].mxu0
    %v603 = vadd.f32 0.0, %v602
    %v604 = vpop.f32.mrb[0].mxu0
    %605 = vdwg.mxu0
    %v607 = vsel %vm203, %v362, 0
    %609 = vmatprep.subr.mxu0 0.0
    %610 = vmatpush1.msra.mxu0 %v365
    %611 = vmatprep.subr.mxu0 0.0
    %612 = vmatpush1.msra.mxu0 0.0
    %613 = vmatprep.subr.mxu0 0.0
    %614 = vmatpush1.msra.mxu0 0.0
    %615 = vmatprep.subr.mxu0 0.0
    %616 = vmatpush1.msra.mxu0 0.0
    %617 = vmatprep.subr.mxu0 0.0
    %618 = vmatpush1.msra.mxu0 0.0
    %619 = vmatprep.subr.mxu0 0.0
    %620 = vmatpush1.msra.mxu0 0.0
    %621 = vmatprep.subr.mxu0 0.0
    %622 = vmatpush1.msra.mxu0 0.0
    %623 = vmatprep.subr.mxu0 0.0
    %624 = vmatpush1.msra.mxu0 0.0
    %625 = vmatprep.subr.mxu0 0.0
    %626 = vmatpush1.msra.mxu0 0.0
    %627 = vmatprep.subr.mxu0 0.0
    %628 = vmatpush1.msra.mxu0 0.0
    %629 = vmatprep.subr.mxu0 0.0
    %630 = vmatpush1.msra.mxu0 0.0
    %631 = vmatprep.subr.mxu0 0.0
    %632 = vmatpush1.msra.mxu0 0.0
    %633 = vmatprep.subr.mxu0 0.0
    %634 = vmatpush1.msra.mxu0 0.0
    %635 = vmatprep.subr.mxu0 0.0
    %636 = vmatpush1.msra.mxu0 0.0
    %637 = vmatprep.subr.mxu0 0.0
    %638 = vmatpush1.msra.mxu0 0.0
    %639 = vmatprep.subr.mxu0 0.0
    %640 = vmatpush1.msra.mxu0 0.0
    %641 = vmatprep.subr.mxu0 0.0
    %642 = vmatpush1.msra.mxu0 0.0
    %643 = vmatprep.subr.mxu0 0.0
    %644 = vmatpush1.msra.mxu0 0.0
    %645 = vmatprep.subr.mxu0 0.0
    %646 = vmatpush1.msra.mxu0 0.0
    %647 = vmatprep.subr.mxu0 0.0
    %648 = vmatpush1.msra.mxu0 0.0
    %649 = vmatprep.subr.mxu0 0.0
    %650 = vmatpush1.msra.mxu0 0.0
    %651 = vmatprep.subr.mxu0 0.0
    %652 = vmatpush1.msra.mxu0 0.0
    %653 = vmatprep.subr.mxu0 0.0
    %654 = vmatpush1.msra.mxu0 0.0
    %655 = vmatprep.subr.mxu0 0.0
    %656 = vmatpush1.msra.mxu0 0.0
    %657 = vmatprep.subr.mxu0 0.0
    %658 = vmatpush1.msra.mxu0 0.0
    %659 = vmatprep.subr.mxu0 0.0
    %660 = vmatpush1.msra.mxu0 0.0
    %661 = vmatprep.subr.mxu0 0.0
    %662 = vmatpush1.msra.mxu0 0.0
    %663 = vmatprep.subr.mxu0 0.0
    %664 = vmatpush1.msra.mxu0 0.0
    %665 = vmatprep.subr.mxu0 0.0
    %666 = vmatpush1.msra.mxu0 0.0
    %667 = vmatprep.subr.mxu0 0.0
    %668 = vmatpush1.msra.mxu0 0.0
    %669 = vmatprep.subr.mxu0 0.0
    %670 = vmatpush1.msra.mxu0 0.0
    %671 = vmatprep.subr.mxu0 0.0
    %672 = vmatpush1.msra.mxu0 0.0
    %673 = vmatprep.mubr.f32.mxu0 0.0
    %674 = vmatmul.mubr.f32.gmra.mrb[0].mxu0 %v607
    %v675 = vpop.f32.mrb[0].mxu0
    %v676 = vadd.f32 %v603, %v675
    %v677 = vpop.f32.mrb[0].mxu0
    %678 = vdwg.mxu0
    %v679 = vadd.f32 %v366, %v455
    %680 = vrot.lane.b32.xlu0 %v192, 112
    %v681 = vpop.permute.xlu0 %680
    %682 = vrot.lane.b32.xlu0 %v192, 80
    %v683 = vpop.permute.xlu0 %682
    %v684 = vsel %vm203, %v681, 0
    %v686 = vsel %vm203, %v683, 0
    %688 = vmatprep.subr.mxu0 0.0
    %689 = vmatpush1.xpose.msra.mxu0 %v686
    %690 = vmatprep.subr.mxu0 0.0
    %691 = vmatpush1.xpose.msra.mxu0 0.0
    %692 = vmatprep.subr.mxu0 0.0
    %693 = vmatpush1.xpose.msra.mxu0 0.0
    %694 = vmatprep.subr.mxu0 0.0
    %695 = vmatpush1.xpose.msra.mxu0 0.0
    %696 = vmatprep.subr.mxu0 0.0
    %697 = vmatpush1.xpose.msra.mxu0 0.0
    %698 = vmatprep.subr.mxu0 0.0
    %699 = vmatpush1.xpose.msra.mxu0 0.0
    %700 = vmatprep.subr.mxu0 0.0
    %701 = vmatpush1.xpose.msra.mxu0 0.0
    %702 = vmatprep.subr.mxu0 0.0
    %703 = vmatpush1.xpose.msra.mxu0 0.0
    %704 = vmatprep.subr.mxu0 0.0
    %705 = vmatpush1.xpose.msra.mxu0 0.0
    %706 = vmatprep.subr.mxu0 0.0
    %707 = vmatpush1.xpose.msra.mxu0 0.0
    %708 = vmatprep.subr.mxu0 0.0
    %709 = vmatpush1.xpose.msra.mxu0 0.0
    %710 = vmatprep.subr.mxu0 0.0
    %711 = vmatpush1.xpose.msra.mxu0 0.0
    %712 = vmatprep.subr.mxu0 0.0
    %713 = vmatpush1.xpose.msra.mxu0 0.0
    %714 = vmatprep.subr.mxu0 0.0
    %715 = vmatpush1.xpose.msra.mxu0 0.0
    %716 = vmatprep.subr.mxu0 0.0
    %717 = vmatpush1.xpose.msra.mxu0 0.0
    %718 = vmatprep.subr.mxu0 0.0
    %719 = vmatpush1.xpose.msra.mxu0 0.0
    %720 = vmatprep.subr.mxu0 0.0
    %721 = vmatpush1.xpose.msra.mxu0 0.0
    %722 = vmatprep.subr.mxu0 0.0
    %723 = vmatpush1.xpose.msra.mxu0 0.0
    %724 = vmatprep.subr.mxu0 0.0
    %725 = vmatpush1.xpose.msra.mxu0 0.0
    %726 = vmatprep.subr.mxu0 0.0
    %727 = vmatpush1.xpose.msra.mxu0 0.0
    %728 = vmatprep.subr.mxu0 0.0
    %729 = vmatpush1.xpose.msra.mxu0 0.0
    %730 = vmatprep.subr.mxu0 0.0
    %731 = vmatpush1.xpose.msra.mxu0 0.0
    %732 = vmatprep.subr.mxu0 0.0
    %733 = vmatpush1.xpose.msra.mxu0 0.0
    %734 = vmatprep.subr.mxu0 0.0
    %735 = vmatpush1.xpose.msra.mxu0 0.0
    %736 = vmatprep.subr.mxu0 0.0
    %737 = vmatpush1.xpose.msra.mxu0 0.0
    %738 = vmatprep.subr.mxu0 0.0
    %739 = vmatpush1.xpose.msra.mxu0 0.0
    %740 = vmatprep.subr.mxu0 0.0
    %741 = vmatpush1.xpose.msra.mxu0 0.0
    %742 = vmatprep.subr.mxu0 0.0
    %743 = vmatpush1.xpose.msra.mxu0 0.0
    %744 = vmatprep.subr.mxu0 0.0
    %745 = vmatpush1.xpose.msra.mxu0 0.0
    %746 = vmatprep.subr.mxu0 0.0
    %747 = vmatpush1.xpose.msra.mxu0 0.0
    %748 = vmatprep.subr.mxu0 0.0
    %749 = vmatpush1.xpose.msra.mxu0 0.0
    %750 = vmatprep.subr.mxu0 0.0
    %751 = vmatpush1.xpose.msra.mxu0 0.0
    %752 = vmatprep.mubr.f32.mxu0 0.0
    %753 = vmatmul.mubr.f32.gmra.mrb[0].mxu0 %v684
    %v754 = vpop.f32.mrb[0].mxu0
    %v755 = vadd.f32 0.0, %v754
    %v756 = vpop.f32.mrb[0].mxu0
    %757 = vdwg.mxu0
    %v758 = vsel %vm203, %v755, -inf
    %759 = vmax.xlane.f32.xlu0 %v758
    %v760 = vpop.xlane.xlu0 %759
    %v761 = vsub.f32 %v755, %v760
    %v762 = vmul.f32 %v761, 1.442695
    %v763 = vpow.pop %v762
    %v764 = vsel %vm203, %v763, 0.0
    %765 = vadd.xlane.f32.xlu0 %v764
    %v766 = vpop.xlane.xlu0 %765
    %v767 = vrcp.pop %v766
    %v768 = vmul.f32 %v763, %v767
    %769 = vrot.lane.b32.xlu0 %v192, 48
    %v770 = vpop.permute.xlu0 %769
    %v773 = vsel %vm203, %v768, 0
    %775 = vmatprep.subr.mxu0 0.0
    %776 = vmatpush1.msra.mxu0 %v770
    %777 = vmatprep.subr.mxu0 0.0
    %778 = vmatpush1.msra.mxu0 0.0
    %779 = vmatprep.subr.mxu0 0.0
    %780 = vmatpush1.msra.mxu0 0.0
    %781 = vmatprep.subr.mxu0 0.0
    %782 = vmatpush1.msra.mxu0 0.0
    %783 = vmatprep.subr.mxu0 0.0
    %784 = vmatpush1.msra.mxu0 0.0
    %785 = vmatprep.subr.mxu0 0.0
    %786 = vmatpush1.msra.mxu0 0.0
    %787 = vmatprep.subr.mxu0 0.0
    %788 = vmatpush1.msra.mxu0 0.0
    %789 = vmatprep.subr.mxu0 0.0
    %790 = vmatpush1.msra.mxu0 0.0
    %791 = vmatprep.subr.mxu0 0.0
    %792 = vmatpush1.msra.mxu0 0.0
    %793 = vmatprep.subr.mxu0 0.0
    %794 = vmatpush1.msra.mxu0 0.0
    %795 = vmatprep.subr.mxu0 0.0
    %796 = vmatpush1.msra.mxu0 0.0
    %797 = vmatprep.subr.mxu0 0.0
    %798 = vmatpush1.msra.mxu0 0.0
    %799 = vmatprep.subr.mxu0 0.0
    %800 = vmatpush1.msra.mxu0 0.0
    %801 = vmatprep.subr.mxu0 0.0
    %802 = vmatpush1.msra.mxu0 0.0
    %803 = vmatprep.subr.mxu0 0.0
    %804 = vmatpush1.msra.mxu0 0.0
    %805 = vmatprep.subr.mxu0 0.0
    %806 = vmatpush1.msra.mxu0 0.0
    %807 = vmatprep.subr.mxu0 0.0
    %808 = vmatpush1.msra.mxu0 0.0
    %809 = vmatprep.subr.mxu0 0.0
    %810 = vmatpush1.msra.mxu0 0.0
    %811 = vmatprep.subr.mxu0 0.0
    %812 = vmatpush1.msra.mxu0 0.0
    %813 = vmatprep.subr.mxu0 0.0
    %814 = vmatpush1.msra.mxu0 0.0
    %815 = vmatprep.subr.mxu0 0.0
    %816 = vmatpush1.msra.mxu0 0.0
    %817 = vmatprep.subr.mxu0 0.0
    %818 = vmatpush1.msra.mxu0 0.0
    %819 = vmatprep.subr.mxu0 0.0
    %820 = vmatpush1.msra.mxu0 0.0
    %821 = vmatprep.subr.mxu0 0.0
    %822 = vmatpush1.msra.mxu0 0.0
    %823 = vmatprep.subr.mxu0 0.0
    %824 = vmatpush1.msra.mxu0 0.0
    %825 = vmatprep.subr.mxu0 0.0
    %826 = vmatpush1.msra.mxu0 0.0
    %827 = vmatprep.subr.mxu0 0.0
    %828 = vmatpush1.msra.mxu0 0.0
    %829 = vmatprep.subr.mxu0 0.0
    %830 = vmatpush1.msra.mxu0 0.0
    %831 = vmatprep.subr.mxu0 0.0
    %832 = vmatpush1.msra.mxu0 0.0
    %833 = vmatprep.subr.mxu0 0.0
    %834 = vmatpush1.msra.mxu0 0.0
    %835 = vmatprep.subr.mxu0 0.0
    %836 = vmatpush1.msra.mxu0 0.0
    %837 = vmatprep.subr.mxu0 0.0
    %838 = vmatpush1.msra.mxu0 0.0
    %839 = vmatprep.mubr.f32.mxu0 0.0
    %840 = vmatmul.mubr.f32.gmra.mrb[0].mxu0 %v773
    %v841 = vpop.f32.mrb[0].mxu0
    %v842 = vadd.f32 0.0, %v841
    %v843 = vpop.f32.mrb[0].mxu0
    %844 = vdwg.mxu0
    %v845 = vld [vmem:[#allocation7 + $0x10] sm:$0xff]
    %v847 = vsel %vm203, %v842, 0
    %849 = vmatprep.subr.mxu0 0.0
    %850 = vmatpush1.msra.mxu0 %v845
    %851 = vmatprep.subr.mxu0 0.0
    %852 = vmatpush1.msra.mxu0 0.0
    %853 = vmatprep.subr.mxu0 0.0
    %854 = vmatpush1.msra.mxu0 0.0
    %855 = vmatprep.subr.mxu0 0.0
    %856 = vmatpush1.msra.mxu0 0.0
    %857 = vmatprep.subr.mxu0 0.0
    %858 = vmatpush1.msra.mxu0 0.0
    %859 = vmatprep.subr.mxu0 0.0
    %860 = vmatpush1.msra.mxu0 0.0
    %861 = vmatprep.subr.mxu0 0.0
    %862 = vmatpush1.msra.mxu0 0.0
    %863 = vmatprep.subr.mxu0 0.0
    %864 = vmatpush1.msra.mxu0 0.0
    %865 = vmatprep.subr.mxu0 0.0
    %866 = vmatpush1.msra.mxu0 0.0
    %867 = vmatprep.subr.mxu0 0.0
    %868 = vmatpush1.msra.mxu0 0.0
    %869 = vmatprep.subr.mxu0 0.0
    %870 = vmatpush1.msra.mxu0 0.0
    %871 = vmatprep.subr.mxu0 0.0
    %872 = vmatpush1.msra.mxu0 0.0
    %873 = vmatprep.subr.mxu0 0.0
    %874 = vmatpush1.msra.mxu0 0.0
    %875 = vmatprep.subr.mxu0 0.0
    %876 = vmatpush1.msra.mxu0 0.0
    %877 = vmatprep.subr.mxu0 0.0
    %878 = vmatpush1.msra.mxu0 0.0
    %879 = vmatprep.subr.mxu0 0.0
    %880 = vmatpush1.msra.mxu0 0.0
    %881 = vmatprep.subr.mxu0 0.0
    %882 = vmatpush1.msra.mxu0 0.0
    %883 = vmatprep.subr.mxu0 0.0
    %884 = vmatpush1.msra.mxu0 0.0
    %885 = vmatprep.subr.mxu0 0.0
    %886 = vmatpush1.msra.mxu0 0.0
    %887 = vmatprep.subr.mxu0 0.0
    %888 = vmatpush1.msra.mxu0 0.0
    %889 = vmatprep.subr.mxu0 0.0
    %890 = vmatpush1.msra.mxu0 0.0
    %891 = vmatprep.subr.mxu0 0.0
    %892 = vmatpush1.msra.mxu0 0.0
    %893 = vmatprep.subr.mxu0 0.0
    %894 = vmatpush1.msra.mxu0 0.0
    %895 = vmatprep.subr.mxu0 0.0
    %896 = vmatpush1.msra.mxu0 0.0
    %897 = vmatprep.subr.mxu0 0.0
    %898 = vmatpush1.msra.mxu0 0.0
    %899 = vmatprep.subr.mxu0 0.0
    %900 = vmatpush1.msra.mxu0 0.0
    %901 = vmatprep.subr.mxu0 0.0
    %902 = vmatpush1.msra.mxu0 0.0
    %903 = vmatprep.subr.mxu0 0.0
    %904 = vmatpush1.msra.mxu0 0.0
    %905 = vmatprep.subr.mxu0 0.0
    %906 = vmatpush1.msra.mxu0 0.0
    %907 = vmatprep.subr.mxu0 0.0
    %908 = vmatpush1.msra.mxu0 0.0
    %909 = vmatprep.subr.mxu0 0.0
    %910 = vmatpush1.msra.mxu0 0.0
    %911 = vmatprep.subr.mxu0 0.0
    %912 = vmatpush1.msra.mxu0 0.0
    %913 = vmatprep.mubr.f32.mxu0 0.0
    %914 = vmatmul.mubr.f32.gmra.mrb[0].mxu0 %v847
    %v915 = vpop.f32.mrb[0].mxu0
    %v916 = vadd.f32 0.0, %v915
    %v917 = vpop.f32.mrb[0].mxu0
    %918 = vdwg.mxu0
    %v919 = vadd.f32 %v676, %v916
    %v920 = vadd.f32 %v679, %v768
    %921 = vrot.lane.b32.xlu0 %v192, 104
    %v922 = vpop.permute.xlu0 %921
    %923 = vrot.lane.b32.xlu0 %v192, 72
    %v924 = vpop.permute.xlu0 %923
    %v925 = vsel %vm203, %v922, 0
    %v927 = vsel %vm203, %v924, 0
    %929 = vmatprep.subr.mxu0 0.0
    %930 = vmatpush1.xpose.msra.mxu0 %v927
    %931 = vmatprep.subr.mxu0 0.0
    %932 = vmatpush1.xpose.msra.mxu0 0.0
    %933 = vmatprep.subr.mxu0 0.0
    %934 = vmatpush1.xpose.msra.mxu0 0.0
    %935 = vmatprep.subr.mxu0 0.0
    %936 = vmatpush1.xpose.msra.mxu0 0.0
    %937 = vmatprep.subr.mxu0 0.0
    %938 = vmatpush1.xpose.msra.mxu0 0.0
    %939 = vmatprep.subr.mxu0 0.0
    %940 = vmatpush1.xpose.msra.mxu0 0.0
    %941 = vmatprep.subr.mxu0 0.0
    %942 = vmatpush1.xpose.msra.mxu0 0.0
    %943 = vmatprep.subr.mxu0 0.0
    %944 = vmatpush1.xpose.msra.mxu0 0.0
    %945 = vmatprep.subr.mxu0 0.0
    %946 = vmatpush1.xpose.msra.mxu0 0.0
    %947 = vmatprep.subr.mxu0 0.0
    %948 = vmatpush1.xpose.msra.mxu0 0.0
    %949 = vmatprep.subr.mxu0 0.0
    %950 = vmatpush1.xpose.msra.mxu0 0.0
    %951 = vmatprep.subr.mxu0 0.0
    %952 = vmatpush1.xpose.msra.mxu0 0.0
    %953 = vmatprep.subr.mxu0 0.0
    %954 = vmatpush1.xpose.msra.mxu0 0.0
    %955 = vmatprep.subr.mxu0 0.0
    %956 = vmatpush1.xpose.msra.mxu0 0.0
    %957 = vmatprep.subr.mxu0 0.0
    %958 = vmatpush1.xpose.msra.mxu0 0.0
    %959 = vmatprep.subr.mxu0 0.0
    %960 = vmatpush1.xpose.msra.mxu0 0.0
    %961 = vmatprep.subr.mxu0 0.0
    %962 = vmatpush1.xpose.msra.mxu0 0.0
    %963 = vmatprep.subr.mxu0 0.0
    %964 = vmatpush1.xpose.msra.mxu0 0.0
    %965 = vmatprep.subr.mxu0 0.0
    %966 = vmatpush1.xpose.msra.mxu0 0.0
    %967 = vmatprep.subr.mxu0 0.0
    %968 = vmatpush1.xpose.msra.mxu0 0.0
    %969 = vmatprep.subr.mxu0 0.0
    %970 = vmatpush1.xpose.msra.mxu0 0.0
    %971 = vmatprep.subr.mxu0 0.0
    %972 = vmatpush1.xpose.msra.mxu0 0.0
    %973 = vmatprep.subr.mxu0 0.0
    %974 = vmatpush1.xpose.msra.mxu0 0.0
    %975 = vmatprep.subr.mxu0 0.0
    %976 = vmatpush1.xpose.msra.mxu0 0.0
    %977 = vmatprep.subr.mxu0 0.0
    %978 = vmatpush1.xpose.msra.mxu0 0.0
    %979 = vmatprep.subr.mxu0 0.0
    %980 = vmatpush1.xpose.msra.mxu0 0.0
    %981 = vmatprep.subr.mxu0 0.0
    %982 = vmatpush1.xpose.msra.mxu0 0.0
    %983 = vmatprep.subr.mxu0 0.0
    %984 = vmatpush1.xpose.msra.mxu0 0.0
    %985 = vmatprep.subr.mxu0 0.0
    %986 = vmatpush1.xpose.msra.mxu0 0.0
    %987 = vmatprep.subr.mxu0 0.0
    %988 = vmatpush1.xpose.msra.mxu0 0.0
    %989 = vmatprep.subr.mxu0 0.0
    %990 = vmatpush1.xpose.msra.mxu0 0.0
    %991 = vmatprep.subr.mxu0 0.0
    %992 = vmatpush1.xpose.msra.mxu0 0.0
    %993 = vmatprep.mubr.f32.mxu0 0.0
    %994 = vmatmul.mubr.f32.gmra.mrb[0].mxu0 %v925
    %v995 = vpop.f32.mrb[0].mxu0
    %v996 = vadd.f32 0.0, %v995
    %v997 = vpop.f32.mrb[0].mxu0
    %998 = vdwg.mxu0
    %v999 = vsel %vm203, %v996, -inf
    %1000 = vmax.xlane.f32.xlu0 %v999
    %v1001 = vpop.xlane.xlu0 %1000
    %v1002 = vsub.f32 %v996, %v1001
    %v1003 = vmul.f32 %v1002, 1.442695
    %v1004 = vpow.pop %v1003
    %v1005 = vsel %vm203, %v1004, 0.0
    %1006 = vadd.xlane.f32.xlu0 %v1005
    %v1007 = vpop.xlane.xlu0 %1006
    %v1008 = vrcp.pop %v1007
    %v1009 = vmul.f32 %v1004, %v1008
    %1010 = vrot.lane.b32.xlu0 %v192, 40
    %v1011 = vpop.permute.xlu0 %1010
    %v1014 = vsel %vm203, %v1009, 0
    %1016 = vmatprep.subr.mxu0 0.0
    %1017 = vmatpush1.msra.mxu0 %v1011
    %1018 = vmatprep.subr.mxu0 0.0
    %1019 = vmatpush1.msra.mxu0 0.0
    %1020 = vmatprep.subr.mxu0 0.0
    %1021 = vmatpush1.msra.mxu0 0.0
    %1022 = vmatprep.subr.mxu0 0.0
    %1023 = vmatpush1.msra.mxu0 0.0
    %1024 = vmatprep.subr.mxu0 0.0
    %1025 = vmatpush1.msra.mxu0 0.0
    %1026 = vmatprep.subr.mxu0 0.0
    %1027 = vmatpush1.msra.mxu0 0.0
    %1028 = vmatprep.subr.mxu0 0.0
    %1029 = vmatpush1.msra.mxu0 0.0
    %1030 = vmatprep.subr.mxu0 0.0
    %1031 = vmatpush1.msra.mxu0 0.0
    %1032 = vmatprep.subr.mxu0 0.0
    %1033 = vmatpush1.msra.mxu0 0.0
    %1034 = vmatprep.subr.mxu0 0.0
    %1035 = vmatpush1.msra.mxu0 0.0
    %1036 = vmatprep.subr.mxu0 0.0
    %1037 = vmatpush1.msra.mxu0 0.0
    %1038 = vmatprep.subr.mxu0 0.0
    %1039 = vmatpush1.msra.mxu0 0.0
    %1040 = vmatprep.subr.mxu0 0.0
    %1041 = vmatpush1.msra.mxu0 0.0
    %1042 = vmatprep.subr.mxu0 0.0
    %1043 = vmatpush1.msra.mxu0 0.0
    %1044 = vmatprep.subr.mxu0 0.0
    %1045 = vmatpush1.msra.mxu0 0.0
    %1046 = vmatprep.subr.mxu0 0.0
    %1047 = vmatpush1.msra.mxu0 0.0
    %1048 = vmatprep.subr.mxu0 0.0
    %1049 = vmatpush1.msra.mxu0 0.0
    %1050 = vmatprep.subr.mxu0 0.0
    %1051 = vmatpush1.msra.mxu0 0.0
    %1052 = vmatprep.subr.mxu0 0.0
    %1053 = vmatpush1.msra.mxu0 0.0
    %1054 = vmatprep.subr.mxu0 0.0
    %1055 = vmatpush1.msra.mxu0 0.0
    %1056 = vmatprep.subr.mxu0 0.0
    %1057 = vmatpush1.msra.mxu0 0.0
    %1058 = vmatprep.subr.mxu0 0.0
    %1059 = vmatpush1.msra.mxu0 0.0
    %1060 = vmatprep.subr.mxu0 0.0
    %1061 = vmatpush1.msra.mxu0 0.0
    %1062 = vmatprep.subr.mxu0 0.0
    %1063 = vmatpush1.msra.mxu0 0.0
    %1064 = vmatprep.subr.mxu0 0.0
    %1065 = vmatpush1.msra.mxu0 0.0
    %1066 = vmatprep.subr.mxu0 0.0
    %1067 = vmatpush1.msra.mxu0 0.0
    %1068 = vmatprep.subr.mxu0 0.0
    %1069 = vmatpush1.msra.mxu0 0.0
    %1070 = vmatprep.subr.mxu0 0.0
    %1071 = vmatpush1.msra.mxu0 0.0
    %1072 = vmatprep.subr.mxu0 0.0
    %1073 = vmatpush1.msra.mxu0 0.0
    %1074 = vmatprep.subr.mxu0 0.0
    %1075 = vmatpush1.msra.mxu0 0.0
    %1076 = vmatprep.subr.mxu0 0.0
    %1077 = vmatpush1.msra.mxu0 0.0
    %1078 = vmatprep.subr.mxu0 0.0
    %1079 = vmatpush1.msra.mxu0 0.0
    %1080 = vmatprep.mubr.f32.mxu0 0.0
    %1081 = vmatmul.mubr.f32.gmra.mrb[0].mxu0 %v1014
    %v1082 = vpop.f32.mrb[0].mxu0
    %v1083 = vadd.f32 0.0, %v1082
    %v1084 = vpop.f32.mrb[0].mxu0
    %1085 = vdwg.mxu0
    %v1086 = vld [vmem:[#allocation7 + $0x18] sm:$0xff]
    %v1088 = vsel %vm203, %v1083, 0
    %1090 = vmatprep.subr.mxu0 0.0
    %1091 = vmatpush1.msra.mxu0 %v1086
    %1092 = vmatprep.subr.mxu0 0.0
    %1093 = vmatpush1.msra.mxu0 0.0
    %1094 = vmatprep.subr.mxu0 0.0
    %1095 = vmatpush1.msra.mxu0 0.0
    %1096 = vmatprep.subr.mxu0 0.0
    %1097 = vmatpush1.msra.mxu0 0.0
    %1098 = vmatprep.subr.mxu0 0.0
    %1099 = vmatpush1.msra.mxu0 0.0
    %1100 = vmatprep.subr.mxu0 0.0
    %1101 = vmatpush1.msra.mxu0 0.0
    %1102 = vmatprep.subr.mxu0 0.0
    %1103 = vmatpush1.msra.mxu0 0.0
    %1104 = vmatprep.subr.mxu0 0.0
    %1105 = vmatpush1.msra.mxu0 0.0
    %1106 = vmatprep.subr.mxu0 0.0
    %1107 = vmatpush1.msra.mxu0 0.0
    %1108 = vmatprep.subr.mxu0 0.0
    %1109 = vmatpush1.msra.mxu0 0.0
    %1110 = vmatprep.subr.mxu0 0.0
    %1111 = vmatpush1.msra.mxu0 0.0
    %1112 = vmatprep.subr.mxu0 0.0
    %1113 = vmatpush1.msra.mxu0 0.0
    %1114 = vmatprep.subr.mxu0 0.0
    %1115 = vmatpush1.msra.mxu0 0.0
    %1116 = vmatprep.subr.mxu0 0.0
    %1117 = vmatpush1.msra.mxu0 0.0
    %1118 = vmatprep.subr.mxu0 0.0
    %1119 = vmatpush1.msra.mxu0 0.0
    %1120 = vmatprep.subr.mxu0 0.0
    %1121 = vmatpush1.msra.mxu0 0.0
    %1122 = vmatprep.subr.mxu0 0.0
    %1123 = vmatpush1.msra.mxu0 0.0
    %1124 = vmatprep.subr.mxu0 0.0
    %1125 = vmatpush1.msra.mxu0 0.0
    %1126 = vmatprep.subr.mxu0 0.0
    %1127 = vmatpush1.msra.mxu0 0.0
    %1128 = vmatprep.subr.mxu0 0.0
    %1129 = vmatpush1.msra.mxu0 0.0
    %1130 = vmatprep.subr.mxu0 0.0
    %1131 = vmatpush1.msra.mxu0 0.0
    %1132 = vmatprep.subr.mxu0 0.0
    %1133 = vmatpush1.msra.mxu0 0.0
    %1134 = vmatprep.subr.mxu0 0.0
    %1135 = vmatpush1.msra.mxu0 0.0
    %1136 = vmatprep.subr.mxu0 0.0
    %1137 = vmatpush1.msra.mxu0 0.0
    %1138 = vmatprep.subr.mxu0 0.0
    %1139 = vmatpush1.msra.mxu0 0.0
    %1140 = vmatprep.subr.mxu0 0.0
    %1141 = vmatpush1.msra.mxu0 0.0
    %1142 = vmatprep.subr.mxu0 0.0
    %1143 = vmatpush1.msra.mxu0 0.0
    %1144 = vmatprep.subr.mxu0 0.0
    %1145 = vmatpush1.msra.mxu0 0.0
    %1146 = vmatprep.subr.mxu0 0.0
    %1147 = vmatpush1.msra.mxu0 0.0
    %1148 = vmatprep.subr.mxu0 0.0
    %1149 = vmatpush1.msra.mxu0 0.0
    %1150 = vmatprep.subr.mxu0 0.0
    %1151 = vmatpush1.msra.mxu0 0.0
    %1152 = vmatprep.subr.mxu0 0.0
    %1153 = vmatpush1.msra.mxu0 0.0
    %1154 = vmatprep.mubr.f32.mxu0 0.0
    %1155 = vmatmul.mubr.f32.gmra.mrb[0].mxu0 %v1088
    %v1156 = vpop.f32.mrb[0].mxu0
    %v1157 = vadd.f32 0.0, %v1156
    %v1158 = vpop.f32.mrb[0].mxu0
    %1159 = vdwg.mxu0
    %v1160 = vadd.f32 %v919, %v1157
    %v1161 = vadd.f32 %v920, %v1009
    %v1162 = vmul.f32 %v1161, 0.25
    %1163 = vst.msk [vmem:[#allocation14] sm:$0xff] %vm203, %v1162
    %1165 = vrot.lane.b32.xlu0 %v197, 96
    %v1166 = vpop.permute.xlu0 %1165
    %v1167 = vsel %vm203, %v197, 0
    %v1169 = vsel %vm203, %v1166, 0
    %1171 = vmatprep.subr.mxu0 0.0
    %1172 = vmatpush1.xpose.msra.mxu0 %v1169
    %1173 = vmatprep.subr.mxu0 0.0
    %1174 = vmatpush1.xpose.msra.mxu0 0.0
    %1175 = vmatprep.subr.mxu0 0.0
    %1176 = vmatpush1.xpose.msra.mxu0 0.0
    %1177 = vmatprep.subr.mxu0 0.0
    %1178 = vmatpush1.xpose.msra.mxu0 0.0
    %1179 = vmatprep.subr.mxu0 0.0
    %1180 = vmatpush1.xpose.msra.mxu0 0.0
    %1181 = vmatprep.subr.mxu0 0.0
    %1182 = vmatpush1.xpose.msra.mxu0 0.0
    %1183 = vmatprep.subr.mxu0 0.0
    %1184 = vmatpush1.xpose.msra.mxu0 0.0
    %1185 = vmatprep.subr.mxu0 0.0
    %1186 = vmatpush1.xpose.msra.mxu0 0.0
    %1187 = vmatprep.subr.mxu0 0.0
    %1188 = vmatpush1.xpose.msra.mxu0 0.0
    %1189 = vmatprep.subr.mxu0 0.0
    %1190 = vmatpush1.xpose.msra.mxu0 0.0
    %1191 = vmatprep.subr.mxu0 0.0
    %1192 = vmatpush1.xpose.msra.mxu0 0.0
    %1193 = vmatprep.subr.mxu0 0.0
    %1194 = vmatpush1.xpose.msra.mxu0 0.0
    %1195 = vmatprep.subr.mxu0 0.0
    %1196 = vmatpush1.xpose.msra.mxu0 0.0
    %1197 = vmatprep.subr.mxu0 0.0
    %1198 = vmatpush1.xpose.msra.mxu0 0.0
    %1199 = vmatprep.subr.mxu0 0.0
    %1200 = vmatpush1.xpose.msra.mxu0 0.0
    %1201 = vmatprep.subr.mxu0 0.0
    %1202 = vmatpush1.xpose.msra.mxu0 0.0
    %1203 = vmatprep.subr.mxu0 0.0
    %1204 = vmatpush1.xpose.msra.mxu0 0.0
    %1205 = vmatprep.subr.mxu0 0.0
    %1206 = vmatpush1.xpose.msra.mxu0 0.0
    %1207 = vmatprep.subr.mxu0 0.0
    %1208 = vmatpush1.xpose.msra.mxu0 0.0
    %1209 = vmatprep.subr.mxu0 0.0
    %1210 = vmatpush1.xpose.msra.mxu0 0.0
    %1211 = vmatprep.subr.mxu0 0.0
    %1212 = vmatpush1.xpose.msra.mxu0 0.0
    %1213 = vmatprep.subr.mxu0 0.0
    %1214 = vmatpush1.xpose.msra.mxu0 0.0
    %1215 = vmatprep.subr.mxu0 0.0
    %1216 = vmatpush1.xpose.msra.mxu0 0.0
    %1217 = vmatprep.subr.mxu0 0.0
    %1218 = vmatpush1.xpose.msra.mxu0 0.0
    %1219 = vmatprep.subr.mxu0 0.0
    %1220 = vmatpush1.xpose.msra.mxu0 0.0
    %1221 = vmatprep.subr.mxu0 0.0
    %1222 = vmatpush1.xpose.msra.mxu0 0.0
    %1223 = vmatprep.subr.mxu0 0.0
    %1224 = vmatpush1.xpose.msra.mxu0 0.0
    %1225 = vmatprep.subr.mxu0 0.0
    %1226 = vmatpush1.xpose.msra.mxu0 0.0
    %1227 = vmatprep.subr.mxu0 0.0
    %1228 = vmatpush1.xpose.msra.mxu0 0.0
    %1229 = vmatprep.subr.mxu0 0.0
    %1230 = vmatpush1.xpose.msra.mxu0 0.0
    %1231 = vmatprep.subr.mxu0 0.0
    %1232 = vmatpush1.xpose.msra.mxu0 0.0
    %1233 = vmatprep.subr.mxu0 0.0
    %1234 = vmatpush1.xpose.msra.mxu0 0.0
    %1235 = vmatprep.mubr.f32.mxu0 0.0
    %1236 = vmatmul.mubr.f32.gmra.mrb[0].mxu0 %v1167
    %v1237 = vpop.f32.mrb[0].mxu0
    %v1238 = vadd.f32 0.0, %v1237
    %v1239 = vpop.f32.mrb[0].mxu0
    %1240 = vdwg.mxu0
    %v1241 = vsel %vm203, %v1238, -inf
    %1242 = vmax.xlane.f32.xlu0 %v1241
    %v1243 = vpop.xlane.xlu0 %1242
    %v1244 = vsub.f32 %v1238, %v1243
    %v1245 = vmul.f32 %v1244, 1.442695
    %v1246 = vpow.pop %v1245
    %v1247 = vsel %vm203, %v1246, 0.0
    %1248 = vadd.xlane.f32.xlu0 %v1247
    %v1249 = vpop.xlane.xlu0 %1248
    %v1250 = vrcp.pop %v1249
    %v1251 = vmul.f32 %v1246, %v1250
    %1252 = vrot.lane.b32.xlu0 %v197, 64
    %v1253 = vpop.permute.xlu0 %1252
    %v1256 = vsel %vm203, %v1251, 0
    %1258 = vmatprep.subr.mxu0 0.0
    %1259 = vmatpush1.msra.mxu0 %v1253
    %1260 = vmatprep.subr.mxu0 0.0
    %1261 = vmatpush1.msra.mxu0 0.0
    %1262 = vmatprep.subr.mxu0 0.0
    %1263 = vmatpush1.msra.mxu0 0.0
    %1264 = vmatprep.subr.mxu0 0.0
    %1265 = vmatpush1.msra.mxu0 0.0
    %1266 = vmatprep.subr.mxu0 0.0
    %1267 = vmatpush1.msra.mxu0 0.0
    %1268 = vmatprep.subr.mxu0 0.0
    %1269 = vmatpush1.msra.mxu0 0.0
    %1270 = vmatprep.subr.mxu0 0.0
    %1271 = vmatpush1.msra.mxu0 0.0
    %1272 = vmatprep.subr.mxu0 0.0
    %1273 = vmatpush1.msra.mxu0 0.0
    %1274 = vmatprep.subr.mxu0 0.0
    %1275 = vmatpush1.msra.mxu0 0.0
    %1276 = vmatprep.subr.mxu0 0.0
    %1277 = vmatpush1.msra.mxu0 0.0
    %1278 = vmatprep.subr.mxu0 0.0
    %1279 = vmatpush1.msra.mxu0 0.0
    %1280 = vmatprep.subr.mxu0 0.0
    %1281 = vmatpush1.msra.mxu0 0.0
    %1282 = vmatprep.subr.mxu0 0.0
    %1283 = vmatpush1.msra.mxu0 0.0
    %1284 = vmatprep.subr.mxu0 0.0
    %1285 = vmatpush1.msra.mxu0 0.0
    %1286 = vmatprep.subr.mxu0 0.0
    %1287 = vmatpush1.msra.mxu0 0.0
    %1288 = vmatprep.subr.mxu0 0.0
    %1289 = vmatpush1.msra.mxu0 0.0
    %1290 = vmatprep.subr.mxu0 0.0
    %1291 = vmatpush1.msra.mxu0 0.0
    %1292 = vmatprep.subr.mxu0 0.0
    %1293 = vmatpush1.msra.mxu0 0.0
    %1294 = vmatprep.subr.mxu0 0.0
    %1295 = vmatpush1.msra.mxu0 0.0
    %1296 = vmatprep.subr.mxu0 0.0
    %1297 = vmatpush1.msra.mxu0 0.0
    %1298 = vmatprep.subr.mxu0 0.0
    %1299 = vmatpush1.msra.mxu0 0.0
    %1300 = vmatprep.subr.mxu0 0.0
    %1301 = vmatpush1.msra.mxu0 0.0
    %1302 = vmatprep.subr.mxu0 0.0
    %1303 = vmatpush1.msra.mxu0 0.0
    %1304 = vmatprep.subr.mxu0 0.0
    %1305 = vmatpush1.msra.mxu0 0.0
    %1306 = vmatprep.subr.mxu0 0.0
    %1307 = vmatpush1.msra.mxu0 0.0
    %1308 = vmatprep.subr.mxu0 0.0
    %1309 = vmatpush1.msra.mxu0 0.0
    %1310 = vmatprep.subr.mxu0 0.0
    %1311 = vmatpush1.msra.mxu0 0.0
    %1312 = vmatprep.subr.mxu0 0.0
    %1313 = vmatpush1.msra.mxu0 0.0
    %1314 = vmatprep.subr.mxu0 0.0
    %1315 = vmatpush1.msra.mxu0 0.0
    %1316 = vmatprep.subr.mxu0 0.0
    %1317 = vmatpush1.msra.mxu0 0.0
    %1318 = vmatprep.subr.mxu0 0.0
    %1319 = vmatpush1.msra.mxu0 0.0
    %1320 = vmatprep.subr.mxu0 0.0
    %1321 = vmatpush1.msra.mxu0 0.0
    %1322 = vmatprep.mubr.f32.mxu0 0.0
    %1323 = vmatmul.mubr.f32.gmra.mrb[0].mxu0 %v1256
    %v1324 = vpop.f32.mrb[0].mxu0
    %v1325 = vadd.f32 0.0, %v1324
    %v1326 = vpop.f32.mrb[0].mxu0
    %1327 = vdwg.mxu0
    %v1328 = vld [vmem:[#allocation7] sm:$0xff]
    %v1329 = vadd.f32 %v1251, 0.0
    %1330 = vrot.lane.b32.xlu0 %v197, 120
    %v1331 = vpop.permute.xlu0 %1330
    %1332 = vrot.lane.b32.xlu0 %v197, 88
    %v1333 = vpop.permute.xlu0 %1332
    %v1334 = vsel %vm203, %v1331, 0
    %v1336 = vsel %vm203, %v1333, 0
    %1338 = vmatprep.subr.mxu0 0.0
    %1339 = vmatpush1.xpose.msra.mxu0 %v1336
    %1340 = vmatprep.subr.mxu0 0.0
    %1341 = vmatpush1.xpose.msra.mxu0 0.0
    %1342 = vmatprep.subr.mxu0 0.0
    %1343 = vmatpush1.xpose.msra.mxu0 0.0
    %1344 = vmatprep.subr.mxu0 0.0
    %1345 = vmatpush1.xpose.msra.mxu0 0.0
    %1346 = vmatprep.subr.mxu0 0.0
    %1347 = vmatpush1.xpose.msra.mxu0 0.0
    %1348 = vmatprep.subr.mxu0 0.0
    %1349 = vmatpush1.xpose.msra.mxu0 0.0
    %1350 = vmatprep.subr.mxu0 0.0
    %1351 = vmatpush1.xpose.msra.mxu0 0.0
    %1352 = vmatprep.subr.mxu0 0.0
    %1353 = vmatpush1.xpose.msra.mxu0 0.0
    %1354 = vmatprep.subr.mxu0 0.0
    %1355 = vmatpush1.xpose.msra.mxu0 0.0
    %1356 = vmatprep.subr.mxu0 0.0
    %1357 = vmatpush1.xpose.msra.mxu0 0.0
    %1358 = vmatprep.subr.mxu0 0.0
    %1359 = vmatpush1.xpose.msra.mxu0 0.0
    %1360 = vmatprep.subr.mxu0 0.0
    %1361 = vmatpush1.xpose.msra.mxu0 0.0
    %1362 = vmatprep.subr.mxu0 0.0
    %1363 = vmatpush1.xpose.msra.mxu0 0.0
    %1364 = vmatprep.subr.mxu0 0.0
    %1365 = vmatpush1.xpose.msra.mxu0 0.0
    %1366 = vmatprep.subr.mxu0 0.0
    %1367 = vmatpush1.xpose.msra.mxu0 0.0
    %1368 = vmatprep.subr.mxu0 0.0
    %1369 = vmatpush1.xpose.msra.mxu0 0.0
    %1370 = vmatprep.subr.mxu0 0.0
    %1371 = vmatpush1.xpose.msra.mxu0 0.0
    %1372 = vmatprep.subr.mxu0 0.0
    %1373 = vmatpush1.xpose.msra.mxu0 0.0
    %1374 = vmatprep.subr.mxu0 0.0
    %1375 = vmatpush1.xpose.msra.mxu0 0.0
    %1376 = vmatprep.subr.mxu0 0.0
    %1377 = vmatpush1.xpose.msra.mxu0 0.0
    %1378 = vmatprep.subr.mxu0 0.0
    %1379 = vmatpush1.xpose.msra.mxu0 0.0
    %1380 = vmatprep.subr.mxu0 0.0
    %1381 = vmatpush1.xpose.msra.mxu0 0.0
    %1382 = vmatprep.subr.mxu0 0.0
    %1383 = vmatpush1.xpose.msra.mxu0 0.0
    %1384 = vmatprep.subr.mxu0 0.0
    %1385 = vmatpush1.xpose.msra.mxu0 0.0
    %1386 = vmatprep.subr.mxu0 0.0
    %1387 = vmatpush1.xpose.msra.mxu0 0.0
    %1388 = vmatprep.subr.mxu0 0.0
    %1389 = vmatpush1.xpose.msra.mxu0 0.0
    %1390 = vmatprep.subr.mxu0 0.0
    %1391 = vmatpush1.xpose.msra.mxu0 0.0
    %1392 = vmatprep.subr.mxu0 0.0
    %1393 = vmatpush1.xpose.msra.mxu0 0.0
    %1394 = vmatprep.subr.mxu0 0.0
    %1395 = vmatpush1.xpose.msra.mxu0 0.0
    %1396 = vmatprep.subr.mxu0 0.0
    %1397 = vmatpush1.xpose.msra.mxu0 0.0
    %1398 = vmatprep.subr.mxu0 0.0
    %1399 = vmatpush1.xpose.msra.mxu0 0.0
    %1400 = vmatprep.subr.mxu0 0.0
    %1401 = vmatpush1.xpose.msra.mxu0 0.0
    %1402 = vmatprep.mubr.f32.mxu0 0.0
    %1403 = vmatmul.mubr.f32.gmra.mrb[0].mxu0 %v1334
    %v1404 = vpop.f32.mrb[0].mxu0
    %v1405 = vadd.f32 0.0, %v1404
    %v1406 = vpop.f32.mrb[0].mxu0
    %1407 = vdwg.mxu0
    %v1408 = vsel %vm203, %v1405, -inf
    %1409 = vmax.xlane.f32.xlu0 %v1408
    %v1410 = vpop.xlane.xlu0 %1409
    %v1411 = vsub.f32 %v1405, %v1410
    %v1412 = vmul.f32 %v1411, 1.442695
    %v1413 = vpow.pop %v1412
    %v1414 = vsel %vm203, %v1413, 0.0
    %1415 = vadd.xlane.f32.xlu0 %v1414
    %v1416 = vpop.xlane.xlu0 %1415
    %v1417 = vrcp.pop %v1416
    %v1418 = vmul.f32 %v1413, %v1417
    %1419 = vrot.lane.b32.xlu0 %v197, 56
    %v1420 = vpop.permute.xlu0 %1419
    %v1423 = vsel %vm203, %v1418, 0
    %1425 = vmatprep.subr.mxu0 0.0
    %1426 = vmatpush1.msra.mxu0 %v1420
    %1427 = vmatprep.subr.mxu0 0.0
    %1428 = vmatpush1.msra.mxu0 0.0
    %1429 = vmatprep.subr.mxu0 0.0
    %1430 = vmatpush1.msra.mxu0 0.0
    %1431 = vmatprep.subr.mxu0 0.0
    %1432 = vmatpush1.msra.mxu0 0.0
    %1433 = vmatprep.subr.mxu0 0.0
    %1434 = vmatpush1.msra.mxu0 0.0
    %1435 = vmatprep.subr.mxu0 0.0
    %1436 = vmatpush1.msra.mxu0 0.0
    %1437 = vmatprep.subr.mxu0 0.0
    %1438 = vmatpush1.msra.mxu0 0.0
    %1439 = vmatprep.subr.mxu0 0.0
    %1440 = vmatpush1.msra.mxu0 0.0
    %1441 = vmatprep.subr.mxu0 0.0
    %1442 = vmatpush1.msra.mxu0 0.0
    %1443 = vmatprep.subr.mxu0 0.0
    %1444 = vmatpush1.msra.mxu0 0.0
    %1445 = vmatprep.subr.mxu0 0.0
    %1446 = vmatpush1.msra.mxu0 0.0
    %1447 = vmatprep.subr.mxu0 0.0
    %1448 = vmatpush1.msra.mxu0 0.0
    %1449 = vmatprep.subr.mxu0 0.0
    %1450 = vmatpush1.msra.mxu0 0.0
    %1451 = vmatprep.subr.mxu0 0.0
    %1452 = vmatpush1.msra.mxu0 0.0
    %1453 = vmatprep.subr.mxu0 0.0
    %1454 = vmatpush1.msra.mxu0 0.0
    %1455 = vmatprep.subr.mxu0 0.0
    %1456 = vmatpush1.msra.mxu0 0.0
    %1457 = vmatprep.subr.mxu0 0.0
    %1458 = vmatpush1.msra.mxu0 0.0
    %1459 = vmatprep.subr.mxu0 0.0
    %1460 = vmatpush1.msra.mxu0 0.0
    %1461 = vmatprep.subr.mxu0 0.0
    %1462 = vmatpush1.msra.mxu0 0.0
    %1463 = vmatprep.subr.mxu0 0.0
    %1464 = vmatpush1.msra.mxu0 0.0
    %1465 = vmatprep.subr.mxu0 0.0
    %1466 = vmatpush1.msra.mxu0 0.0
    %1467 = vmatprep.subr.mxu0 0.0
    %1468 = vmatpush1.msra.mxu0 0.0
    %1469 = vmatprep.subr.mxu0 0.0
    %1470 = vmatpush1.msra.mxu0 0.0
    %1471 = vmatprep.subr.mxu0 0.0
    %1472 = vmatpush1.msra.mxu0 0.0
    %1473 = vmatprep.subr.mxu0 0.0
    %1474 = vmatpush1.msra.mxu0 0.0
    %1475 = vmatprep.subr.mxu0 0.0
    %1476 = vmatpush1.msra.mxu0 0.0
    %1477 = vmatprep.subr.mxu0 0.0
    %1478 = vmatpush1.msra.mxu0 0.0
    %1479 = vmatprep.subr.mxu0 0.0
    %1480 = vmatpush1.msra.mxu0 0.0
    %1481 = vmatprep.subr.mxu0 0.0
    %1482 = vmatpush1.msra.mxu0 0.0
    %1483 = vmatprep.subr.mxu0 0.0
    %1484 = vmatpush1.msra.mxu0 0.0
    %1485 = vmatprep.subr.mxu0 0.0
    %1486 = vmatpush1.msra.mxu0 0.0
    %1487 = vmatprep.subr.mxu0 0.0
    %1488 = vmatpush1.msra.mxu0 0.0
    %1489 = vmatprep.mubr.f32.mxu0 0.0
    %1490 = vmatmul.mubr.f32.gmra.mrb[0].mxu0 %v1423
    %v1491 = vpop.f32.mrb[0].mxu0
    %v1492 = vadd.f32 0.0, %v1491
    %v1493 = vpop.f32.mrb[0].mxu0
    %1494 = vdwg.mxu0
    %v1495 = vld [vmem:[#allocation7 + $0x8] sm:$0xff]
    %v1497 = vsel %vm203, %v1492, 0
    %1499 = vmatprep.subr.mxu0 0.0
    %1500 = vmatpush1.msra.mxu0 %v1495
    %1501 = vmatprep.subr.mxu0 0.0
    %1502 = vmatpush1.msra.mxu0 0.0
    %1503 = vmatprep.subr.mxu0 0.0
    %1504 = vmatpush1.msra.mxu0 0.0
    %1505 = vmatprep.subr.mxu0 0.0
    %1506 = vmatpush1.msra.mxu0 0.0
    %1507 = vmatprep.subr.mxu0 0.0
    %1508 = vmatpush1.msra.mxu0 0.0
    %1509 = vmatprep.subr.mxu0 0.0
    %1510 = vmatpush1.msra.mxu0 0.0
    %1511 = vmatprep.subr.mxu0 0.0
    %1512 = vmatpush1.msra.mxu0 0.0
    %1513 = vmatprep.subr.mxu0 0.0
    %1514 = vmatpush1.msra.mxu0 0.0
    %1515 = vmatprep.subr.mxu0 0.0
    %1516 = vmatpush1.msra.mxu0 0.0
    %1517 = vmatprep.subr.mxu0 0.0
    %1518 = vmatpush1.msra.mxu0 0.0
    %1519 = vmatprep.subr.mxu0 0.0
    %1520 = vmatpush1.msra.mxu0 0.0
    %1521 = vmatprep.subr.mxu0 0.0
    %1522 = vmatpush1.msra.mxu0 0.0
    %1523 = vmatprep.subr.mxu0 0.0
    %1524 = vmatpush1.msra.mxu0 0.0
    %1525 = vmatprep.subr.mxu0 0.0
    %1526 = vmatpush1.msra.mxu0 0.0
    %1527 = vmatprep.subr.mxu0 0.0
    %1528 = vmatpush1.msra.mxu0 0.0
    %1529 = vmatprep.subr.mxu0 0.0
    %1530 = vmatpush1.msra.mxu0 0.0
    %1531 = vmatprep.subr.mxu0 0.0
    %1532 = vmatpush1.msra.mxu0 0.0
    %1533 = vmatprep.subr.mxu0 0.0
    %1534 = vmatpush1.msra.mxu0 0.0
    %1535 = vmatprep.subr.mxu0 0.0
    %1536 = vmatpush1.msra.mxu0 0.0
    %1537 = vmatprep.subr.mxu0 0.0
    %1538 = vmatpush1.msra.mxu0 0.0
    %1539 = vmatprep.subr.mxu0 0.0
    %1540 = vmatpush1.msra.mxu0 0.0
    %1541 = vmatprep.subr.mxu0 0.0
    %1542 = vmatpush1.msra.mxu0 0.0
    %1543 = vmatprep.subr.mxu0 0.0
    %1544 = vmatpush1.msra.mxu0 0.0
    %1545 = vmatprep.subr.mxu0 0.0
    %1546 = vmatpush1.msra.mxu0 0.0
    %1547 = vmatprep.subr.mxu0 0.0
    %1548 = vmatpush1.msra.mxu0 0.0
    %1549 = vmatprep.subr.mxu0 0.0
    %1550 = vmatpush1.msra.mxu0 0.0
    %1551 = vmatprep.subr.mxu0 0.0
    %1552 = vmatpush1.msra.mxu0 0.0
    %1553 = vmatprep.subr.mxu0 0.0
    %1554 = vmatpush1.msra.mxu0 0.0
    %1555 = vmatprep.subr.mxu0 0.0
    %1556 = vmatpush1.msra.mxu0 0.0
    %1557 = vmatprep.subr.mxu0 0.0
    %1558 = vmatpush1.msra.mxu0 0.0
    %1559 = vmatprep.subr.mxu0 0.0
    %1560 = vmatpush1.msra.mxu0 0.0
    %1561 = vmatprep.subr.mxu0 0.0
    %1562 = vmatpush1.msra.mxu0 0.0
    %1563 = vmatprep.mubr.f32.mxu0 0.0
    %1564 = vmatmul.mubr.f32.gmra.mrb[0].mxu0 %v1497
    %v1565 = vpop.f32.mrb[0].mxu0
    %v1566 = vadd.f32 0.0, %v1565
    %v1567 = vpop.f32.mrb[0].mxu0
    %1568 = vdwg.mxu0
    %v1570 = vsel %vm203, %v1325, 0
    %1572 = vmatprep.subr.mxu0 0.0
    %1573 = vmatpush1.msra.mxu0 %v1328
    %1574 = vmatprep.subr.mxu0 0.0
    %1575 = vmatpush1.msra.mxu0 0.0
    %1576 = vmatprep.subr.mxu0 0.0
    %1577 = vmatpush1.msra.mxu0 0.0
    %1578 = vmatprep.subr.mxu0 0.0
    %1579 = vmatpush1.msra.mxu0 0.0
    %1580 = vmatprep.subr.mxu0 0.0
    %1581 = vmatpush1.msra.mxu0 0.0
    %1582 = vmatprep.subr.mxu0 0.0
    %1583 = vmatpush1.msra.mxu0 0.0
    %1584 = vmatprep.subr.mxu0 0.0
    %1585 = vmatpush1.msra.mxu0 0.0
    %1586 = vmatprep.subr.mxu0 0.0
    %1587 = vmatpush1.msra.mxu0 0.0
    %1588 = vmatprep.subr.mxu0 0.0
    %1589 = vmatpush1.msra.mxu0 0.0
    %1590 = vmatprep.subr.mxu0 0.0
    %1591 = vmatpush1.msra.mxu0 0.0
    %1592 = vmatprep.subr.mxu0 0.0
    %1593 = vmatpush1.msra.mxu0 0.0
    %1594 = vmatprep.subr.mxu0 0.0
    %1595 = vmatpush1.msra.mxu0 0.0
    %1596 = vmatprep.subr.mxu0 0.0
    %1597 = vmatpush1.msra.mxu0 0.0
    %1598 = vmatprep.subr.mxu0 0.0
    %1599 = vmatpush1.msra.mxu0 0.0
    %1600 = vmatprep.subr.mxu0 0.0
    %1601 = vmatpush1.msra.mxu0 0.0
    %1602 = vmatprep.subr.mxu0 0.0
    %1603 = vmatpush1.msra.mxu0 0.0
    %1604 = vmatprep.subr.mxu0 0.0
    %1605 = vmatpush1.msra.mxu0 0.0
    %1606 = vmatprep.subr.mxu0 0.0
    %1607 = vmatpush1.msra.mxu0 0.0
    %1608 = vmatprep.subr.mxu0 0.0
    %1609 = vmatpush1.msra.mxu0 0.0
    %1610 = vmatprep.subr.mxu0 0.0
    %1611 = vmatpush1.msra.mxu0 0.0
    %1612 = vmatprep.subr.mxu0 0.0
    %1613 = vmatpush1.msra.mxu0 0.0
    %1614 = vmatprep.subr.mxu0 0.0
    %1615 = vmatpush1.msra.mxu0 0.0
    %1616 = vmatprep.subr.mxu0 0.0
    %1617 = vmatpush1.msra.mxu0 0.0
    %1618 = vmatprep.subr.mxu0 0.0
    %1619 = vmatpush1.msra.mxu0 0.0
    %1620 = vmatprep.subr.mxu0 0.0
    %1621 = vmatpush1.msra.mxu0 0.0
    %1622 = vmatprep.subr.mxu0 0.0
    %1623 = vmatpush1.msra.mxu0 0.0
    %1624 = vmatprep.subr.mxu0 0.0
    %1625 = vmatpush1.msra.mxu0 0.0
    %1626 = vmatprep.subr.mxu0 0.0
    %1627 = vmatpush1.msra.mxu0 0.0
    %1628 = vmatprep.subr.mxu0 0.0
    %1629 = vmatpush1.msra.mxu0 0.0
    %1630 = vmatprep.subr.mxu0 0.0
    %1631 = vmatpush1.msra.mxu0 0.0
    %1632 = vmatprep.subr.mxu0 0.0
    %1633 = vmatpush1.msra.mxu0 0.0
    %1634 = vmatprep.subr.mxu0 0.0
    %1635 = vmatpush1.msra.mxu0 0.0
    %1636 = vmatprep.mubr.f32.mxu0 0.0
    %1637 = vmatmul.mubr.f32.gmra.mrb[0].mxu0 %v1570
    %v1638 = vpop.f32.mrb[0].mxu0
    %v1639 = vadd.f32 %v1566, %v1638
    %v1640 = vpop.f32.mrb[0].mxu0
    %1641 = vdwg.mxu0
    %v1642 = vadd.f32 %v1329, %v1418
    %1643 = vrot.lane.b32.xlu0 %v197, 112
    %v1644 = vpop.permute.xlu0 %1643
    %1645 = vrot.lane.b32.xlu0 %v197, 80
    %v1646 = vpop.permute.xlu0 %1645
    %v1647 = vsel %vm203, %v1644, 0
    %v1649 = vsel %vm203, %v1646, 0
    %1651 = vmatprep.subr.mxu0 0.0
    %1652 = vmatpush1.xpose.msra.mxu0 %v1649
    %1653 = vmatprep.subr.mxu0 0.0
    %1654 = vmatpush1.xpose.msra.mxu0 0.0
    %1655 = vmatprep.subr.mxu0 0.0
    %1656 = vmatpush1.xpose.msra.mxu0 0.0
    %1657 = vmatprep.subr.mxu0 0.0
    %1658 = vmatpush1.xpose.msra.mxu0 0.0
    %1659 = vmatprep.subr.mxu0 0.0
    %1660 = vmatpush1.xpose.msra.mxu0 0.0
    %1661 = vmatprep.subr.mxu0 0.0
    %1662 = vmatpush1.xpose.msra.mxu0 0.0
    %1663 = vmatprep.subr.mxu0 0.0
    %1664 = vmatpush1.xpose.msra.mxu0 0.0
    %1665 = vmatprep.subr.mxu0 0.0
    %1666 = vmatpush1.xpose.msra.mxu0 0.0
    %1667 = vmatprep.subr.mxu0 0.0
    %1668 = vmatpush1.xpose.msra.mxu0 0.0
    %1669 = vmatprep.subr.mxu0 0.0
    %1670 = vmatpush1.xpose.msra.mxu0 0.0
    %1671 = vmatprep.subr.mxu0 0.0
    %1672 = vmatpush1.xpose.msra.mxu0 0.0
    %1673 = vmatprep.subr.mxu0 0.0
    %1674 = vmatpush1.xpose.msra.mxu0 0.0
    %1675 = vmatprep.subr.mxu0 0.0
    %1676 = vmatpush1.xpose.msra.mxu0 0.0
    %1677 = vmatprep.subr.mxu0 0.0
    %1678 = vmatpush1.xpose.msra.mxu0 0.0
    %1679 = vmatprep.subr.mxu0 0.0
    %1680 = vmatpush1.xpose.msra.mxu0 0.0
    %1681 = vmatprep.subr.mxu0 0.0
    %1682 = vmatpush1.xpose.msra.mxu0 0.0
    %1683 = vmatprep.subr.mxu0 0.0
    %1684 = vmatpush1.xpose.msra.mxu0 0.0
    %1685 = vmatprep.subr.mxu0 0.0
    %1686 = vmatpush1.xpose.msra.mxu0 0.0
    %1687 = vmatprep.subr.mxu0 0.0
    %1688 = vmatpush1.xpose.msra.mxu0 0.0
    %1689 = vmatprep.subr.mxu0 0.0
    %1690 = vmatpush1.xpose.msra.mxu0 0.0
    %1691 = vmatprep.subr.mxu0 0.0
    %1692 = vmatpush1.xpose.msra.mxu0 0.0
    %1693 = vmatprep.subr.mxu0 0.0
    %1694 = vmatpush1.xpose.msra.mxu0 0.0
    %1695 = vmatprep.subr.mxu0 0.0
    %1696 = vmatpush1.xpose.msra.mxu0 0.0
    %1697 = vmatprep.subr.mxu0 0.0
    %1698 = vmatpush1.xpose.msra.mxu0 0.0
    %1699 = vmatprep.subr.mxu0 0.0
    %1700 = vmatpush1.xpose.msra.mxu0 0.0
    %1701 = vmatprep.subr.mxu0 0.0
    %1702 = vmatpush1.xpose.msra.mxu0 0.0
    %1703 = vmatprep.subr.mxu0 0.0
    %1704 = vmatpush1.xpose.msra.mxu0 0.0
    %1705 = vmatprep.subr.mxu0 0.0
    %1706 = vmatpush1.xpose.msra.mxu0 0.0
    %1707 = vmatprep.subr.mxu0 0.0
    %1708 = vmatpush1.xpose.msra.mxu0 0.0
    %1709 = vmatprep.subr.mxu0 0.0
    %1710 = vmatpush1.xpose.msra.mxu0 0.0
    %1711 = vmatprep.subr.mxu0 0.0
    %1712 = vmatpush1.xpose.msra.mxu0 0.0
    %1713 = vmatprep.subr.mxu0 0.0
    %1714 = vmatpush1.xpose.msra.mxu0 0.0
    %1715 = vmatprep.mubr.f32.mxu0 0.0
    %1716 = vmatmul.mubr.f32.gmra.mrb[0].mxu0 %v1647
    %v1717 = vpop.f32.mrb[0].mxu0
    %v1718 = vadd.f32 0.0, %v1717
    %v1719 = vpop.f32.mrb[0].mxu0
    %1720 = vdwg.mxu0
    %v1721 = vsel %vm203, %v1718, -inf
    %1722 = vmax.xlane.f32.xlu0 %v1721
    %v1723 = vpop.xlane.xlu0 %1722
    %v1724 = vsub.f32 %v1718, %v1723
    %v1725 = vmul.f32 %v1724, 1.442695
    %v1726 = vpow.pop %v1725
    %v1727 = vsel %vm203, %v1726, 0.0
    %1728 = vadd.xlane.f32.xlu0 %v1727
    %v1729 = vpop.xlane.xlu0 %1728
    %v1730 = vrcp.pop %v1729
    %v1731 = vmul.f32 %v1726, %v1730
    %1732 = vrot.lane.b32.xlu0 %v197, 48
    %v1733 = vpop.permute.xlu0 %1732
    %v1736 = vsel %vm203, %v1731, 0
    %1738 = vmatprep.subr.mxu0 0.0
    %1739 = vmatpush1.msra.mxu0 %v1733
    %1740 = vmatprep.subr.mxu0 0.0
    %1741 = vmatpush1.msra.mxu0 0.0
    %1742 = vmatprep.subr.mxu0 0.0
    %1743 = vmatpush1.msra.mxu0 0.0
    %1744 = vmatprep.subr.mxu0 0.0
    %1745 = vmatpush1.msra.mxu0 0.0
    %1746 = vmatprep.subr.mxu0 0.0
    %1747 = vmatpush1.msra.mxu0 0.0
    %1748 = vmatprep.subr.mxu0 0.0
    %1749 = vmatpush1.msra.mxu0 0.0
    %1750 = vmatprep.subr.mxu0 0.0
    %1751 = vmatpush1.msra.mxu0 0.0
    %1752 = vmatprep.subr.mxu0 0.0
    %1753 = vmatpush1.msra.mxu0 0.0
    %1754 = vmatprep.subr.mxu0 0.0
    %1755 = vmatpush1.msra.mxu0 0.0
    %1756 = vmatprep.subr.mxu0 0.0
    %1757 = vmatpush1.msra.mxu0 0.0
    %1758 = vmatprep.subr.mxu0 0.0
    %1759 = vmatpush1.msra.mxu0 0.0
    %1760 = vmatprep.subr.mxu0 0.0
    %1761 = vmatpush1.msra.mxu0 0.0
    %1762 = vmatprep.subr.mxu0 0.0
    %1763 = vmatpush1.msra.mxu0 0.0
    %1764 = vmatprep.subr.mxu0 0.0
    %1765 = vmatpush1.msra.mxu0 0.0
    %1766 = vmatprep.subr.mxu0 0.0
    %1767 = vmatpush1.msra.mxu0 0.0
    %1768 = vmatprep.subr.mxu0 0.0
    %1769 = vmatpush1.msra.mxu0 0.0
    %1770 = vmatprep.subr.mxu0 0.0
    %1771 = vmatpush1.msra.mxu0 0.0
    %1772 = vmatprep.subr.mxu0 0.0
    %1773 = vmatpush1.msra.mxu0 0.0
    %1774 = vmatprep.subr.mxu0 0.0
    %1775 = vmatpush1.msra.mxu0 0.0
    %1776 = vmatprep.subr.mxu0 0.0
    %1777 = vmatpush1.msra.mxu0 0.0
    %1778 = vmatprep.subr.mxu0 0.0
    %1779 = vmatpush1.msra.mxu0 0.0
    %1780 = vmatprep.subr.mxu0 0.0
    %1781 = vmatpush1.msra.mxu0 0.0
    %1782 = vmatprep.subr.mxu0 0.0
    %1783 = vmatpush1.msra.mxu0 0.0
    %1784 = vmatprep.subr.mxu0 0.0
    %1785 = vmatpush1.msra.mxu0 0.0
    %1786 = vmatprep.subr.mxu0 0.0
    %1787 = vmatpush1.msra.mxu0 0.0
    %1788 = vmatprep.subr.mxu0 0.0
    %1789 = vmatpush1.msra.mxu0 0.0
    %1790 = vmatprep.subr.mxu0 0.0
    %1791 = vmatpush1.msra.mxu0 0.0
    %1792 = vmatprep.subr.mxu0 0.0
    %1793 = vmatpush1.msra.mxu0 0.0
    %1794 = vmatprep.subr.mxu0 0.0
    %1795 = vmatpush1.msra.mxu0 0.0
    %1796 = vmatprep.subr.mxu0 0.0
    %1797 = vmatpush1.msra.mxu0 0.0
    %1798 = vmatprep.subr.mxu0 0.0
    %1799 = vmatpush1.msra.mxu0 0.0
    %1800 = vmatprep.subr.mxu0 0.0
    %1801 = vmatpush1.msra.mxu0 0.0
    %1802 = vmatprep.mubr.f32.mxu0 0.0
    %1803 = vmatmul.mubr.f32.gmra.mrb[0].mxu0 %v1736
    %v1804 = vpop.f32.mrb[0].mxu0
    %v1805 = vadd.f32 0.0, %v1804
    %v1806 = vpop.f32.mrb[0].mxu0
    %1807 = vdwg.mxu0
    %v1808 = vld [vmem:[#allocation7 + $0x10] sm:$0xff]
    %v1810 = vsel %vm203, %v1805, 0
    %1812 = vmatprep.subr.mxu0 0.0
    %1813 = vmatpush1.msra.mxu0 %v1808
    %1814 = vmatprep.subr.mxu0 0.0
    %1815 = vmatpush1.msra.mxu0 0.0
    %1816 = vmatprep.subr.mxu0 0.0
    %1817 = vmatpush1.msra.mxu0 0.0
    %1818 = vmatprep.subr.mxu0 0.0
    %1819 = vmatpush1.msra.mxu0 0.0
    %1820 = vmatprep.subr.mxu0 0.0
    %1821 = vmatpush1.msra.mxu0 0.0
    %1822 = vmatprep.subr.mxu0 0.0
    %1823 = vmatpush1.msra.mxu0 0.0
    %1824 = vmatprep.subr.mxu0 0.0
    %1825 = vmatpush1.msra.mxu0 0.0
    %1826 = vmatprep.subr.mxu0 0.0
    %1827 = vmatpush1.msra.mxu0 0.0
    %1828 = vmatprep.subr.mxu0 0.0
    %1829 = vmatpush1.msra.mxu0 0.0
    %1830 = vmatprep.subr.mxu0 0.0
    %1831 = vmatpush1.msra.mxu0 0.0
    %1832 = vmatprep.subr.mxu0 0.0
    %1833 = vmatpush1.msra.mxu0 0.0
    %1834 = vmatprep.subr.mxu0 0.0
    %1835 = vmatpush1.msra.mxu0 0.0
    %1836 = vmatprep.subr.mxu0 0.0
    %1837 = vmatpush1.msra.mxu0 0.0
    %1838 = vmatprep.subr.mxu0 0.0
    %1839 = vmatpush1.msra.mxu0 0.0
    %1840 = vmatprep.subr.mxu0 0.0
    %1841 = vmatpush1.msra.mxu0 0.0
    %1842 = vmatprep.subr.mxu0 0.0
    %1843 = vmatpush1.msra.mxu0 0.0
    %1844 = vmatprep.subr.mxu0 0.0
    %1845 = vmatpush1.msra.mxu0 0.0
    %1846 = vmatprep.subr.mxu0 0.0
    %1847 = vmatpush1.msra.mxu0 0.0
    %1848 = vmatprep.subr.mxu0 0.0
    %1849 = vmatpush1.msra.mxu0 0.0
    %1850 = vmatprep.subr.mxu0 0.0
    %1851 = vmatpush1.msra.mxu0 0.0
    %1852 = vmatprep.subr.mxu0 0.0
    %1853 = vmatpush1.msra.mxu0 0.0
    %1854 = vmatprep.subr.mxu0 0.0
    %1855 = vmatpush1.msra.mxu0 0.0
    %1856 = vmatprep.subr.mxu0 0.0
    %1857 = vmatpush1.msra.mxu0 0.0
    %1858 = vmatprep.subr.mxu0 0.0
    %1859 = vmatpush1.msra.mxu0 0.0
    %1860 = vmatprep.subr.mxu0 0.0
    %1861 = vmatpush1.msra.mxu0 0.0
    %1862 = vmatprep.subr.mxu0 0.0
    %1863 = vmatpush1.msra.mxu0 0.0
    %1864 = vmatprep.subr.mxu0 0.0
    %1865 = vmatpush1.msra.mxu0 0.0
    %1866 = vmatprep.subr.mxu0 0.0
    %1867 = vmatpush1.msra.mxu0 0.0
    %1868 = vmatprep.subr.mxu0 0.0
    %1869 = vmatpush1.msra.mxu0 0.0
    %1870 = vmatprep.subr.mxu0 0.0
    %1871 = vmatpush1.msra.mxu0 0.0
    %1872 = vmatprep.subr.mxu0 0.0
    %1873 = vmatpush1.msra.mxu0 0.0
    %1874 = vmatprep.subr.mxu0 0.0
    %1875 = vmatpush1.msra.mxu0 0.0
    %1876 = vmatprep.mubr.f32.mxu0 0.0
    %1877 = vmatmul.mubr.f32.gmra.mrb[0].mxu0 %v1810
    %v1878 = vpop.f32.mrb[0].mxu0
    %v1879 = vadd.f32 0.0, %v1878
    %v1880 = vpop.f32.mrb[0].mxu0
    %1881 = vdwg.mxu0
    %v1882 = vadd.f32 %v1639, %v1879
    %v1883 = vadd.f32 %v1642, %v1731
    %1884 = vrot.lane.b32.xlu0 %v197, 104
    %v1885 = vpop.permute.xlu0 %1884
    %1886 = vrot.lane.b32.xlu0 %v197, 72
    %v1887 = vpop.permute.xlu0 %1886
    %v1888 = vsel %vm203, %v1885, 0
    %v1890 = vsel %vm203, %v1887, 0
    %1892 = vmatprep.subr.mxu0 0.0
    %1893 = vmatpush1.xpose.msra.mxu0 %v1890
    %1894 = vmatprep.subr.mxu0 0.0
    %1895 = vmatpush1.xpose.msra.mxu0 0.0
    %1896 = vmatprep.subr.mxu0 0.0
    %1897 = vmatpush1.xpose.msra.mxu0 0.0
    %1898 = vmatprep.subr.mxu0 0.0
    %1899 = vmatpush1.xpose.msra.mxu0 0.0
    %1900 = vmatprep.subr.mxu0 0.0
    %1901 = vmatpush1.xpose.msra.mxu0 0.0
    %1902 = vmatprep.subr.mxu0 0.0
    %1903 = vmatpush1.xpose.msra.mxu0 0.0
    %1904 = vmatprep.subr.mxu0 0.0
    %1905 = vmatpush1.xpose.msra.mxu0 0.0
    %1906 = vmatprep.subr.mxu0 0.0
    %1907 = vmatpush1.xpose.msra.mxu0 0.0
    %1908 = vmatprep.subr.mxu0 0.0
    %1909 = vmatpush1.xpose.msra.mxu0 0.0
    %1910 = vmatprep.subr.mxu0 0.0
    %1911 = vmatpush1.xpose.msra.mxu0 0.0
    %1912 = vmatprep.subr.mxu0 0.0
    %1913 = vmatpush1.xpose.msra.mxu0 0.0
    %1914 = vmatprep.subr.mxu0 0.0
    %1915 = vmatpush1.xpose.msra.mxu0 0.0
    %1916 = vmatprep.subr.mxu0 0.0
    %1917 = vmatpush1.xpose.msra.mxu0 0.0
    %1918 = vmatprep.subr.mxu0 0.0
    %1919 = vmatpush1.xpose.msra.mxu0 0.0
    %1920 = vmatprep.subr.mxu0 0.0
    %1921 = vmatpush1.xpose.msra.mxu0 0.0
    %1922 = vmatprep.subr.mxu0 0.0
    %1923 = vmatpush1.xpose.msra.mxu0 0.0
    %1924 = vmatprep.subr.mxu0 0.0
    %1925 = vmatpush1.xpose.msra.mxu0 0.0
    %1926 = vmatprep.subr.mxu0 0.0
    %1927 = vmatpush1.xpose.msra.mxu0 0.0
    %1928 = vmatprep.subr.mxu0 0.0
    %1929 = vmatpush1.xpose.msra.mxu0 0.0
    %1930 = vmatprep.subr.mxu0 0.0
    %1931 = vmatpush1.xpose.msra.mxu0 0.0
    %1932 = vmatprep.subr.mxu0 0.0
    %1933 = vmatpush1.xpose.msra.mxu0 0.0
    %1934 = vmatprep.subr.mxu0 0.0
    %1935 = vmatpush1.xpose.msra.mxu0 0.0
    %1936 = vmatprep.subr.mxu0 0.0
    %1937 = vmatpush1.xpose.msra.mxu0 0.0
    %1938 = vmatprep.subr.mxu0 0.0
    %1939 = vmatpush1.xpose.msra.mxu0 0.0
    %1940 = vmatprep.subr.mxu0 0.0
    %1941 = vmatpush1.xpose.msra.mxu0 0.0
    %1942 = vmatprep.subr.mxu0 0.0
    %1943 = vmatpush1.xpose.msra.mxu0 0.0
    %1944 = vmatprep.subr.mxu0 0.0
    %1945 = vmatpush1.xpose.msra.mxu0 0.0
    %1946 = vmatprep.subr.mxu0 0.0
    %1947 = vmatpush1.xpose.msra.mxu0 0.0
    %1948 = vmatprep.subr.mxu0 0.0
    %1949 = vmatpush1.xpose.msra.mxu0 0.0
    %1950 = vmatprep.subr.mxu0 0.0
    %1951 = vmatpush1.xpose.msra.mxu0 0.0
    %1952 = vmatprep.subr.mxu0 0.0
    %1953 = vmatpush1.xpose.msra.mxu0 0.0
    %1954 = vmatprep.subr.mxu0 0.0
    %1955 = vmatpush1.xpose.msra.mxu0 0.0
    %1956 = vmatprep.mubr.f32.mxu0 0.0
    %1957 = vmatmul.mubr.f32.gmra.mrb[0].mxu0 %v1888
    %v1958 = vpop.f32.mrb[0].mxu0
    %v1959 = vadd.f32 0.0, %v1958
    %v1960 = vpop.f32.mrb[0].mxu0
    %1961 = vdwg.mxu0
    %v1962 = vsel %vm203, %v1959, -inf
    %1963 = vmax.xlane.f32.xlu0 %v1962
    %v1964 = vpop.xlane.xlu0 %1963
    %v1965 = vsub.f32 %v1959, %v1964
    %v1966 = vmul.f32 %v1965, 1.442695
    %v1967 = vpow.pop %v1966
    %v1968 = vsel %vm203, %v1967, 0.0
    %1969 = vadd.xlane.f32.xlu0 %v1968
    %v1970 = vpop.xlane.xlu0 %1969
    %v1971 = vrcp.pop %v1970
    %v1972 = vmul.f32 %v1967, %v1971
    %1973 = vrot.lane.b32.xlu0 %v197, 40
    %v1974 = vpop.permute.xlu0 %1973
    %v1977 = vsel %vm203, %v1972, 0
    %1979 = vmatprep.subr.mxu0 0.0
    %1980 = vmatpush1.msra.mxu0 %v1974
    %1981 = vmatprep.subr.mxu0 0.0
    %1982 = vmatpush1.msra.mxu0 0.0
    %1983 = vmatprep.subr.mxu0 0.0
    %1984 = vmatpush1.msra.mxu0 0.0
    %1985 = vmatprep.subr.mxu0 0.0
    %1986 = vmatpush1.msra.mxu0 0.0
    %1987 = vmatprep.subr.mxu0 0.0
    %1988 = vmatpush1.msra.mxu0 0.0
    %1989 = vmatprep.subr.mxu0 0.0
    %1990 = vmatpush1.msra.mxu0 0.0
    %1991 = vmatprep.subr.mxu0 0.0
    %1992 = vmatpush1.msra.mxu0 0.0
    %1993 = vmatprep.subr.mxu0 0.0
    %1994 = vmatpush1.msra.mxu0 0.0
    %1995 = vmatprep.subr.mxu0 0.0
    %1996 = vmatpush1.msra.mxu0 0.0
    %1997 = vmatprep.subr.mxu0 0.0
    %1998 = vmatpush1.msra.mxu0 0.0
    %1999 = vmatprep.subr.mxu0 0.0
    %2000 = vmatpush1.msra.mxu0 0.0
    %2001 = vmatprep.subr.mxu0 0.0
    %2002 = vmatpush1.msra.mxu0 0.0
    %2003 = vmatprep.subr.mxu0 0.0
    %2004 = vmatpush1.msra.mxu0 0.0
    %2005 = vmatprep.subr.mxu0 0.0
    %2006 = vmatpush1.msra.mxu0 0.0
    %2007 = vmatprep.subr.mxu0 0.0
    %2008 = vmatpush1.msra.mxu0 0.0
    %2009 = vmatprep.subr.mxu0 0.0
    %2010 = vmatpush1.msra.mxu0 0.0
    %2011 = vmatprep.subr.mxu0 0.0
    %2012 = vmatpush1.msra.mxu0 0.0
    %2013 = vmatprep.subr.mxu0 0.0
    %2014 = vmatpush1.msra.mxu0 0.0
    %2015 = vmatprep.subr.mxu0 0.0
    %2016 = vmatpush1.msra.mxu0 0.0
    %2017 = vmatprep.subr.mxu0 0.0
    %2018 = vmatpush1.msra.mxu0 0.0
    %2019 = vmatprep.subr.mxu0 0.0
    %2020 = vmatpush1.msra.mxu0 0.0
    %2021 = vmatprep.subr.mxu0 0.0
    %2022 = vmatpush1.msra.mxu0 0.0
    %2023 = vmatprep.subr.mxu0 0.0
    %2024 = vmatpush1.msra.mxu0 0.0
    %2025 = vmatprep.subr.mxu0 0.0
    %2026 = vmatpush1.msra.mxu0 0.0
    %2027 = vmatprep.subr.mxu0 0.0
    %2028 = vmatpush1.msra.mxu0 0.0
    %2029 = vmatprep.subr.mxu0 0.0
    %2030 = vmatpush1.msra.mxu0 0.0
    %2031 = vmatprep.subr.mxu0 0.0
    %2032 = vmatpush1.msra.mxu0 0.0
    %2033 = vmatprep.subr.mxu0 0.0
    %2034 = vmatpush1.msra.mxu0 0.0
    %2035 = vmatprep.subr.mxu0 0.0
    %2036 = vmatpush1.msra.mxu0 0.0
    %2037 = vmatprep.subr.mxu0 0.0
    %2038 = vmatpush1.msra.mxu0 0.0
    %2039 = vmatprep.subr.mxu0 0.0
    %2040 = vmatpush1.msra.mxu0 0.0
    %2041 = vmatprep.subr.mxu0 0.0
    %2042 = vmatpush1.msra.mxu0 0.0
    %2043 = vmatprep.mubr.f32.mxu0 0.0
    %2044 = vmatmul.mubr.f32.gmra.mrb[0].mxu0 %v1977
    %v2045 = vpop.f32.mrb[0].mxu0
    %v2046 = vadd.f32 0.0, %v2045
    %v2047 = vpop.f32.mrb[0].mxu0
    %2048 = vdwg.mxu0
    %v2049 = vld [vmem:[#allocation7 + $0x18] sm:$0xff]
    %v2051 = vsel %vm203, %v2046, 0
    %2053 = vmatprep.subr.mxu0 0.0
    %2054 = vmatpush1.msra.mxu0 %v2049
    %2055 = vmatprep.subr.mxu0 0.0
    %2056 = vmatpush1.msra.mxu0 0.0
    %2057 = vmatprep.subr.mxu0 0.0
    %2058 = vmatpush1.msra.mxu0 0.0
    %2059 = vmatprep.subr.mxu0 0.0
    %2060 = vmatpush1.msra.mxu0 0.0
    %2061 = vmatprep.subr.mxu0 0.0
    %2062 = vmatpush1.msra.mxu0 0.0
    %2063 = vmatprep.subr.mxu0 0.0
    %2064 = vmatpush1.msra.mxu0 0.0
    %2065 = vmatprep.subr.mxu0 0.0
    %2066 = vmatpush1.msra.mxu0 0.0
    %2067 = vmatprep.subr.mxu0 0.0
    %2068 = vmatpush1.msra.mxu0 0.0
    %2069 = vmatprep.subr.mxu0 0.0
    %2070 = vmatpush1.msra.mxu0 0.0
    %2071 = vmatprep.subr.mxu0 0.0
    %2072 = vmatpush1.msra.mxu0 0.0
    %2073 = vmatprep.subr.mxu0 0.0
    %2074 = vmatpush1.msra.mxu0 0.0
    %2075 = vmatprep.subr.mxu0 0.0
    %2076 = vmatpush1.msra.mxu0 0.0
    %2077 = vmatprep.subr.mxu0 0.0
    %2078 = vmatpush1.msra.mxu0 0.0
    %2079 = vmatprep.subr.mxu0 0.0
    %2080 = vmatpush1.msra.mxu0 0.0
    %2081 = vmatprep.subr.mxu0 0.0
    %2082 = vmatpush1.msra.mxu0 0.0
    %2083 = vmatprep.subr.mxu0 0.0
    %2084 = vmatpush1.msra.mxu0 0.0
    %2085 = vmatprep.subr.mxu0 0.0
    %2086 = vmatpush1.msra.mxu0 0.0
    %2087 = vmatprep.subr.mxu0 0.0
    %2088 = vmatpush1.msra.mxu0 0.0
    %2089 = vmatprep.subr.mxu0 0.0
    %2090 = vmatpush1.msra.mxu0 0.0
    %2091 = vmatprep.subr.mxu0 0.0
    %2092 = vmatpush1.msra.mxu0 0.0
    %2093 = vmatprep.subr.mxu0 0.0
    %2094 = vmatpush1.msra.mxu0 0.0
    %2095 = vmatprep.subr.mxu0 0.0
    %2096 = vmatpush1.msra.mxu0 0.0
    %2097 = vmatprep.subr.mxu0 0.0
    %2098 = vmatpush1.msra.mxu0 0.0
    %2099 = vmatprep.subr.mxu0 0.0
    %2100 = vmatpush1.msra.mxu0 0.0
    %2101 = vmatprep.subr.mxu0 0.0
    %2102 = vmatpush1.msra.mxu0 0.0
    %2103 = vmatprep.subr.mxu0 0.0
    %2104 = vmatpush1.msra.mxu0 0.0
    %2105 = vmatprep.subr.mxu0 0.0
    %2106 = vmatpush1.msra.mxu0 0.0
    %2107 = vmatprep.subr.mxu0 0.0
    %2108 = vmatpush1.msra.mxu0 0.0
    %2109 = vmatprep.subr.mxu0 0.0
    %2110 = vmatpush1.msra.mxu0 0.0
    %2111 = vmatprep.subr.mxu0 0.0
    %2112 = vmatpush1.msra.mxu0 0.0
    %2113 = vmatprep.subr.mxu0 0.0
    %2114 = vmatpush1.msra.mxu0 0.0
    %2115 = vmatprep.subr.mxu0 0.0
    %2116 = vmatpush1.msra.mxu0 0.0
    %2117 = vmatprep.mubr.f32.mxu0 0.0
    %2118 = vmatmul.mubr.f32.gmra.mrb[0].mxu0 %v2051
    %v2119 = vpop.f32.mrb[0].mxu0
    %v2120 = vadd.f32 0.0, %v2119
    %v2121 = vpop.f32.mrb[0].mxu0
    %2122 = vdwg.mxu0
    %v2123 = vadd.f32 %v1882, %v2120
    %v2124 = vadd.f32 %v1883, %v1972
    %v2125 = vmul.f32 %v2124, 0.25
    %2126 = vst.msk [vmem:[#allocation14 + $0x8] sm:$0xff] %vm203, %v2125
    %v2127 = vlaneseq
    %v2128 = vshrl.u32 %v2127, 7
    %v2129 = vsub.s32 1, %v2128
    %v2130 = vrot.slane %v109, %v2129
    %v2131 = vadd.f32 %v1160, %v2130
    %v2132 = vadd.f32 %v2123, %v2130
    %v2133 = vadd.f32 %v107, %v2131
    %v2134 = vadd.f32 %v108, %v2132
    %v2135 = vsel %vm118, %v2133, 0.0
    %2136 = vadd.xlane.f32.xlu0 %v2135
    %v2137 = vpop.xlane.xlu0 %2136
    %v2138 = vsel %vm118, %v2134, 0.0
    %2139 = vadd.xlane.f32.xlu0 %v2138
    %v2140 = vpop.xlane.xlu0 %2139
    %v2141 = vrcp.pop 32.0
    %v2142 = vmul.f32 %v2137, %v2141
    %v2143 = vmul.f32 %v2140, %v2141
    %v2144 = vsub.f32 %v2133, %v2142
    %v2145 = vsub.f32 %v2134, %v2143
    %v2146 = vmul.f32 %v2144, %v2144
    %v2147 = vmul.f32 %v2145, %v2145
    %v2148 = vsel %vm118, %v2146, 0.0
    %2149 = vadd.xlane.f32.xlu0 %v2148
    %v2150 = vpop.xlane.xlu0 %2149
    %v2151 = vsel %vm118, %v2147, 0.0
    %2152 = vadd.xlane.f32.xlu0 %v2151
    %v2153 = vpop.xlane.xlu0 %2152
    %v2154 = vmul.f32 %v2150, %v2141
    %v2155 = vmul.f32 %v2153, %v2141
    %v2156 = vadd.f32 %v2154, 1e-05
    %v2157 = vadd.f32 %v2155, 1e-05
    %v2158 = vrsqrt.pop %v2156
    %v2159 = vrsqrt.pop %v2157
    %v2160 = vmul.f32 %v2144, %v2158
    %v2161 = vmul.f32 %v2145, %v2159
    %v2162 = vlaneseq
    %v2163 = vshrl.u32 %v2162, 7
    %v2164 = vsub.s32 4, %v2163
    %v2165 = vrot.slane %v109, %v2164
    %v2166 = vmul.f32 %v2160, %v2165
    %v2167 = vmul.f32 %v2161, %v2165
    %v2168 = vlaneseq
    %v2169 = vshrl.u32 %v2168, 7
    %v2170 = vsub.s32 5, %v2169
    %v2171 = vrot.slane %v109, %v2170
    %v2172 = vadd.f32 %v2166, %v2171
    %v2173 = vadd.f32 %v2167, %v2171
    %v2174 = vld [vmem:[#allocation8] sm:$0xff]
    %v2175 = vld [vmem:[#allocation8 + $0x8] sm:$0xff]
    %v2176 = vld [vmem:[#allocation8 + $0x10] sm:$0xff]
    %v2177 = vld [vmem:[#allocation8 + $0x18] sm:$0xff]
    %v2178 = vlaneseq
    %v2179 = vshrl.u32 %v2178, 7
    %v2180 = vsub.s32 2, %v2179
    %v2181 = vrot.slane %v109, %v2180
    %v2183 = vsel %vm118, %v2172, 0
    %v2186 = vsel %vm118, %v2173, 0
    %2188 = vmatprep.subr.mxu0 0.0
    %2189 = vmatpush1.msra.mxu0 %v2174
    %2190 = vmatprep.subr.mxu0 0.0
    %2191 = vmatpush1.msra.mxu0 %v2175
    %2192 = vmatprep.subr.mxu0 0.0
    %2193 = vmatpush1.msra.mxu0 %v2176
    %2194 = vmatprep.subr.mxu0 0.0
    %2195 = vmatpush1.msra.mxu0 %v2177
    %2196 = vmatprep.subr.mxu0 0.0
    %2197 = vmatpush1.msra.mxu0 0.0
    %2198 = vmatprep.subr.mxu0 0.0
    %2199 = vmatpush1.msra.mxu0 0.0
    %2200 = vmatprep.subr.mxu0 0.0
    %2201 = vmatpush1.msra.mxu0 0.0
    %2202 = vmatprep.subr.mxu0 0.0
    %2203 = vmatpush1.msra.mxu0 0.0
    %2204 = vmatprep.subr.mxu0 0.0
    %2205 = vmatpush1.msra.mxu0 0.0
    %2206 = vmatprep.subr.mxu0 0.0
    %2207 = vmatpush1.msra.mxu0 0.0
    %2208 = vmatprep.subr.mxu0 0.0
    %2209 = vmatpush1.msra.mxu0 0.0
    %2210 = vmatprep.subr.mxu0 0.0
    %2211 = vmatpush1.msra.mxu0 0.0
    %2212 = vmatprep.subr.mxu0 0.0
    %2213 = vmatpush1.msra.mxu0 0.0
    %2214 = vmatprep.subr.mxu0 0.0
    %2215 = vmatpush1.msra.mxu0 0.0
    %2216 = vmatprep.subr.mxu0 0.0
    %2217 = vmatpush1.msra.mxu0 0.0
    %2218 = vmatprep.subr.mxu0 0.0
    %2219 = vmatpush1.msra.mxu0 0.0
    %2220 = vmatprep.subr.mxu0 0.0
    %2221 = vmatpush1.msra.mxu0 0.0
    %2222 = vmatprep.subr.mxu0 0.0
    %2223 = vmatpush1.msra.mxu0 0.0
    %2224 = vmatprep.subr.mxu0 0.0
    %2225 = vmatpush1.msra.mxu0 0.0
    %2226 = vmatprep.subr.mxu0 0.0
    %2227 = vmatpush1.msra.mxu0 0.0
    %2228 = vmatprep.subr.mxu0 0.0
    %2229 = vmatpush1.msra.mxu0 0.0
    %2230 = vmatprep.subr.mxu0 0.0
    %2231 = vmatpush1.msra.mxu0 0.0
    %2232 = vmatprep.subr.mxu0 0.0
    %2233 = vmatpush1.msra.mxu0 0.0
    %2234 = vmatprep.subr.mxu0 0.0
    %2235 = vmatpush1.msra.mxu0 0.0
    %2236 = vmatprep.subr.mxu0 0.0
    %2237 = vmatpush1.msra.mxu0 0.0
    %2238 = vmatprep.subr.mxu0 0.0
    %2239 = vmatpush1.msra.mxu0 0.0
    %2240 = vmatprep.subr.mxu0 0.0
    %2241 = vmatpush1.msra.mxu0 0.0
    %2242 = vmatprep.subr.mxu0 0.0
    %2243 = vmatpush1.msra.mxu0 0.0
    %2244 = vmatprep.subr.mxu0 0.0
    %2245 = vmatpush1.msra.mxu0 0.0
    %2246 = vmatprep.subr.mxu0 0.0
    %2247 = vmatpush1.msra.mxu0 0.0
    %2248 = vmatprep.subr.mxu0 0.0
    %2249 = vmatpush1.msra.mxu0 0.0
    %2250 = vmatprep.subr.mxu0 0.0
    %2251 = vmatpush1.msra.mxu0 0.0
    %2252 = vmatprep.mubr.f32.mxu0 0.0
    %2253 = vmatmul.mubr.f32.gmra.mrb[0].mxu0 %v2183
    %v2254 = vpop.f32.mrb[0].mxu0
    %v2255 = vadd.f32 %v2181, %v2254
    %v2256 = vpop.f32.mrb[0].mxu0
    %2257 = vmatprep.mubr.f32.mxu0 0.0
    %2258 = vmatmul.mubr.f32.gmra.mrb[0].mxu0 %v2186
    %v2259 = vpop.f32.mrb[0].mxu0
    %v2260 = vadd.f32 %v2181, %v2259
    %v2261 = vpop.f32.mrb[0].mxu0
    %2262 = vdwg.mxu0
    %v2263 = vmax.f32 %v2255, 0.0
    %v2264 = vmax.f32 %v2260, 0.0
    %v2265 = vld [vmem:[#allocation10] sm:$0xff]
    %v2266 = vld [vmem:[#allocation10 + $0x8] sm:$0xff]
    %v2267 = vld [vmem:[#allocation10 + $0x10] sm:$0xff]
    %v2268 = vld [vmem:[#allocation10 + $0x18] sm:$0xff]
    %v2269 = vlaneseq
    %v2270 = vshrl.u32 %v2269, 7
    %v2271 = vsub.s32 3, %v2270
    %v2272 = vrot.slane %v109, %v2271
    %v2274 = vsel %vm118, %v2263, 0
    %v2277 = vsel %vm118, %v2264, 0
    %2279 = vmatprep.subr.mxu0 0.0
    %2280 = vmatpush1.msra.mxu0 %v2265
    %2281 = vmatprep.subr.mxu0 0.0
    %2282 = vmatpush1.msra.mxu0 %v2266
    %2283 = vmatprep.subr.mxu0 0.0
    %2284 = vmatpush1.msra.mxu0 %v2267
    %2285 = vmatprep.subr.mxu0 0.0
    %2286 = vmatpush1.msra.mxu0 %v2268
    %2287 = vmatprep.subr.mxu0 0.0
    %2288 = vmatpush1.msra.mxu0 0.0
    %2289 = vmatprep.subr.mxu0 0.0
    %2290 = vmatpush1.msra.mxu0 0.0
    %2291 = vmatprep.subr.mxu0 0.0
    %2292 = vmatpush1.msra.mxu0 0.0
    %2293 = vmatprep.subr.mxu0 0.0
    %2294 = vmatpush1.msra.mxu0 0.0
    %2295 = vmatprep.subr.mxu0 0.0
    %2296 = vmatpush1.msra.mxu0 0.0
    %2297 = vmatprep.subr.mxu0 0.0
    %2298 = vmatpush1.msra.mxu0 0.0
    %2299 = vmatprep.subr.mxu0 0.0
    %2300 = vmatpush1.msra.mxu0 0.0
    %2301 = vmatprep.subr.mxu0 0.0
    %2302 = vmatpush1.msra.mxu0 0.0
    %2303 = vmatprep.subr.mxu0 0.0
    %2304 = vmatpush1.msra.mxu0 0.0
    %2305 = vmatprep.subr.mxu0 0.0
    %2306 = vmatpush1.msra.mxu0 0.0
    %2307 = vmatprep.subr.mxu0 0.0
    %2308 = vmatpush1.msra.mxu0 0.0
    %2309 = vmatprep.subr.mxu0 0.0
    %2310 = vmatpush1.msra.mxu0 0.0
    %2311 = vmatprep.subr.mxu0 0.0
    %2312 = vmatpush1.msra.mxu0 0.0
    %2313 = vmatprep.subr.mxu0 0.0
    %2314 = vmatpush1.msra.mxu0 0.0
    %2315 = vmatprep.subr.mxu0 0.0
    %2316 = vmatpush1.msra.mxu0 0.0
    %2317 = vmatprep.subr.mxu0 0.0
    %2318 = vmatpush1.msra.mxu0 0.0
    %2319 = vmatprep.subr.mxu0 0.0
    %2320 = vmatpush1.msra.mxu0 0.0
    %2321 = vmatprep.subr.mxu0 0.0
    %2322 = vmatpush1.msra.mxu0 0.0
    %2323 = vmatprep.subr.mxu0 0.0
    %2324 = vmatpush1.msra.mxu0 0.0
    %2325 = vmatprep.subr.mxu0 0.0
    %2326 = vmatpush1.msra.mxu0 0.0
    %2327 = vmatprep.subr.mxu0 0.0
    %2328 = vmatpush1.msra.mxu0 0.0
    %2329 = vmatprep.subr.mxu0 0.0
    %2330 = vmatpush1.msra.mxu0 0.0
    %2331 = vmatprep.subr.mxu0 0.0
    %2332 = vmatpush1.msra.mxu0 0.0
    %2333 = vmatprep.subr.mxu0 0.0
    %2334 = vmatpush1.msra.mxu0 0.0
    %2335 = vmatprep.subr.mxu0 0.0
    %2336 = vmatpush1.msra.mxu0 0.0
    %2337 = vmatprep.subr.mxu0 0.0
    %2338 = vmatpush1.msra.mxu0 0.0
    %2339 = vmatprep.subr.mxu0 0.0
    %2340 = vmatpush1.msra.mxu0 0.0
    %2341 = vmatprep.subr.mxu0 0.0
    %2342 = vmatpush1.msra.mxu0 0.0
    %2343 = vmatprep.mubr.f32.mxu0 0.0
    %2344 = vmatmul.mubr.f32.gmra.mrb[0].mxu0 %v2274
    %v2345 = vpop.f32.mrb[0].mxu0
    %v2346 = vadd.f32 %v2272, %v2345
    %v2347 = vpop.f32.mrb[0].mxu0
    %2348 = vmatprep.mubr.f32.mxu0 0.0
    %2349 = vmatmul.mubr.f32.gmra.mrb[0].mxu0 %v2277
    %v2350 = vpop.f32.mrb[0].mxu0
    %v2351 = vadd.f32 %v2272, %v2350
    %v2352 = vpop.f32.mrb[0].mxu0
    %2353 = vdwg.mxu0
    %v2354 = vadd.f32 %v2172, %v2346
    %v2355 = vadd.f32 %v2173, %v2351
    %v2356 = vsel %vm118, %v2354, 0.0
    %2357 = vadd.xlane.f32.xlu0 %v2356
    %v2358 = vpop.xlane.xlu0 %2357
    %v2359 = vsel %vm118, %v2355, 0.0
    %2360 = vadd.xlane.f32.xlu0 %v2359
    %v2361 = vpop.xlane.xlu0 %2360
    %v2362 = vmul.f32 %v2358, %v2141
    %v2363 = vmul.f32 %v2361, %v2141
    %v2364 = vsub.f32 %v2354, %v2362
    %v2365 = vsub.f32 %v2355, %v2363
    %v2366 = vmul.f32 %v2364, %v2364
    %v2367 = vmul.f32 %v2365, %v2365
    %v2368 = vsel %vm118, %v2366, 0.0
    %2369 = vadd.xlane.f32.xlu0 %v2368
    %v2370 = vpop.xlane.xlu0 %2369
    %v2371 = vsel %vm118, %v2367, 0.0
    %2372 = vadd.xlane.f32.xlu0 %v2371
    %v2373 = vpop.xlane.xlu0 %2372
    %v2374 = vmul.f32 %v2370, %v2141
    %v2375 = vmul.f32 %v2373, %v2141
    %v2376 = vadd.f32 %v2374, 1e-05
    %v2377 = vadd.f32 %v2375, 1e-05
    %v2378 = vrsqrt.pop %v2376
    %v2379 = vrsqrt.pop %v2377
    %v2380 = vmul.f32 %v2364, %v2378
    %v2381 = vmul.f32 %v2365, %v2379
    %v2382 = vlaneseq
    %v2383 = vshrl.u32 %v2382, 7
    %v2384 = vsub.s32 6, %v2383
    %v2385 = vrot.slane %v109, %v2384
    %v2386 = vmul.f32 %v2380, %v2385
    %v2387 = vmul.f32 %v2381, %v2385
    %v2388 = vlaneseq
    %v2389 = vshrl.u32 %v2388, 7
    %v2390 = vsub.s32 7, %v2389
    %v2391 = vrot.slane %v109, %v2390
    %v2392 = vadd.f32 %v2386, %v2391
    %v2393 = vadd.f32 %v2387, %v2391
    %2394 = vst.msk [vmem:[#allocation13] sm:$0xff] %vm118, %v2392
    %2395 = vst.msk [vmem:[#allocation13 + $0x8] sm:$0xff] %vm118, %v2393
    // Predicated region
    $region50: #{self_attn_layer.1} parent=1 // pred_check
      _
    $region51: #{self_attn_layer.1} parent=1 // pred_check_branch
      %2397 = sbr.rel (0) target = $region53
    $region52: #{self_attn_layer.1} parent=1 // pred_region
      %s2399 = ssub.s32 256, 256
      %2400 = vsyncadd [#allocation4], %s2399
      %s2401 = sshll.u32 [#allocation13], 4
      %s2402 = int_to_ptr.vmem [resolvable:$true] %s2401
      %2407 = dma.vmem_to_hbm [thread:$0]  %s2402, 256, %s6, [#allocation4], 128, 128, 8
    $region53: #{self_attn_layer.1} parent=1 // pred_fallthru
      _
    // Predicated region
    $region54: #{self_attn_layer.1} parent=1 // pred_check
      _
    $region55: #{self_attn_layer.1} parent=1 // pred_check_branch
      %2409 = sbr.rel (0) target = $region57
    $region56: #{self_attn_layer.1} parent=1 // pred_region
      %s2411 = ssub.s32 256, 256
      %2412 = vsyncadd [#allocation15], %s2411
      %s2413 = sshll.u32 [#allocation14], 4
      %s2414 = int_to_ptr.vmem [resolvable:$true] %s2413
      %2419 = dma.vmem_to_hbm [thread:$0]  %s2414, 256, %s7, [#allocation15], 128, 128, 8
    $region57: #{self_attn_layer.1} parent=1 // pred_fallthru
      _
    // Predicated region
    $region58: #{self_attn_layer.1} parent=1 // pred_check
      _
    $region59: #{self_attn_layer.1} parent=1 // pred_check_branch
      %2421 = sbr.rel (0) target = $region61
    $region60: #{self_attn_layer.1} parent=1 // pred_region
      %2422 = dma.done [#allocation4], 256
    $region61: #{self_attn_layer.1} parent=1 // pred_fallthru
      _
    // Predicated region
    $region62: #{self_attn_layer.1} parent=1 // pred_check
      _
    $region63: #{self_attn_layer.1} parent=1 // pred_check_branch
      %2424 = sbr.rel (0) target = $region65
    $region64: #{self_attn_layer.1} parent=1 // pred_region
      %2425 = dma.done [#allocation15], 256
    $region65: #{self_attn_layer.1} parent=1 // pred_fallthru
      _
    %2426 = vsyncpa [#allocation3], 1
    %2427 = vsyncpa [#allocation6], 1
    %2428 = vsyncpa [#allocation9], 1
    %2429 = vsyncpa [#allocation12], 1
    %2430 = vsyncpa [#allocation4], 1
    %2431 = vsyncpa [#allocation15], 1

</llo_original>
